<compile_context>
chip_gen: v7x
topology: tpu7x:2x2x1
jax: 0.10.0
libtpu: 0.0.40
codegen_flags: <defaults>
</compile_context>

<pallas_src>
import math

import jax
import jax.numpy as jnp
from jax import lax
from jax.experimental import pallas as pl
from jax.experimental.pallas import tpu as pltpu

# ----------------------------- config (small, Ankh/T5-v1.1-style) ----------
VOCAB = 64
D_MODEL = 32
NUM_HEADS = 2
D_KV = 16                      # head dim; inner_dim = NUM_HEADS * D_KV = D_MODEL
INNER = NUM_HEADS * D_KV
D_FF = 64
NUM_LAYERS = 2
REL_BUCKETS = 8
REL_MAX_DIST = 128
LN_EPS = 1e-6
NEG_INF = -1e9


# ----------------------------- fused encoder kernel -------------------------
def _rmsnorm(x, w):
    # T5LayerNorm: RMS norm, no mean subtraction, no bias, fp32 math.
    var = jnp.mean(x * x, axis=-1, keepdims=True)
    return x * lax.rsqrt(var + LN_EPS) * w


def encoder_kernel(x_ref, mask_ref, bias_ref,
                   ln1_ref, wqkv_ref, wo_ref,
                   ln2_ref, wi0_ref, wi1_ref, wffo_ref,
                   lnf_ref, o_ref):
    BT, S, D = x_ref.shape
    M = BT * S

    # Whole batch tile resident; weight matmuls run on the flattened [M, D] slab.
    h = x_ref[...].astype(jnp.float32).reshape(M, D)          # [M, D] f32
    mask_add = mask_ref[...]                                   # [BT, 1, S] additive

    # Hoisted, loop-invariant (position bias + mask) per head: [BT, S, S] each.
    bm = [bias_ref[hd] + mask_add for hd in range(NUM_HEADS)]

    for li in range(NUM_LAYERS):
        # ---------------- self-attention sublayer -------------------------
        normed = _rmsnorm(h, ln1_ref[li])                                  # [M, D]
        qkv = jnp.dot(normed.astype(jnp.bfloat16), wqkv_ref[li],
                      preferred_element_type=jnp.float32)                  # [M, 3*INNER]
        qkv_bf = qkv.astype(jnp.bfloat16)                                  # cast once

        ctx_heads = []
        for hd in range(NUM_HEADS):
            qh = qkv_bf[:, hd * D_KV:(hd + 1) * D_KV].reshape(BT, S, D_KV)
            kh = qkv_bf[:, INNER + hd * D_KV:
                        INNER + (hd + 1) * D_KV].reshape(BT, S, D_KV)
            vh = qkv_bf[:, 2 * INNER + hd * D_KV:
                        2 * INNER + (hd + 1) * D_KV].reshape(BT, S, D_KV)

            # Unscaled T5 attention scores + (bias + mask), batched over BT.
            s = jnp.einsum('bqd,bkd->bqk', qh, kh,
                           preferred_element_type=jnp.float32)             # [BT,S,S]
            s = s + bm[hd]

            mx = jnp.max(s, axis=-1, keepdims=True)
            p = jnp.exp(s - mx)
            p = p * pl.reciprocal(jnp.sum(p, axis=-1, keepdims=True), approx=True)

            ctx_heads.append(jnp.einsum('bqk,bkd->bqd', p.astype(jnp.bfloat16),
                                        vh, preferred_element_type=jnp.float32))

        # Merge heads and do ONE fused output projection (K = INNER = 32).
        ctx = jnp.concatenate(ctx_heads, axis=-1).reshape(M, INNER)
        h = h + jnp.dot(ctx.astype(jnp.bfloat16), wo_ref[li],
                        preferred_element_type=jnp.float32)                # residual

        # ---------------- gated-GELU feed-forward sublayer -----------------
        normed = _rmsnorm(h, ln2_ref[li]).astype(jnp.bfloat16)             # [M, D] bf16
        h0 = jnp.dot(normed, wi0_ref[li], preferred_element_type=jnp.float32)
        h1 = jnp.dot(normed, wi1_ref[li], preferred_element_type=jnp.float32)
        c = 0.7978845608028654  # sqrt(2/pi)
        g = 0.5 * h0 * (1.0 + jnp.tanh(c * (h0 + 0.044715 * h0 * h0 * h0)))
        hg = (g * h1).astype(jnp.bfloat16)
        h = h + jnp.dot(hg, wffo_ref[li], preferred_element_type=jnp.float32)

    # ---------------- final layer norm -------------------------------------
    o_ref[...] = _rmsnorm(h, lnf_ref[...]).reshape(BT, S, D)
    # TODO(synk): output_attentions=True path (returning per-layer attention
    # probabilities) is not materialized; only last_hidden_state is produced.


# ----------------------------- plain-JAX glue --------------------------------
def _relative_position_bucket(relative_position, num_buckets, max_distance):
    # bidirectional (encoder) bucketing, matches HF T5 implementation
    num_buckets //= 2
    buckets = (relative_position > 0).astype(jnp.int32) * num_buckets
    rp = jnp.abs(relative_position)
    max_exact = num_buckets // 2
    is_small = rp < max_exact
    rp_f = jnp.maximum(rp, 1).astype(jnp.float32)
    rp_large = max_exact + (
        jnp.log(rp_f / max_exact) / math.log(max_distance / max_exact)
        * (num_buckets - max_exact)
    ).astype(jnp.int32)
    rp_large = jnp.minimum(rp_large, num_buckets - 1)
    return buckets + jnp.where(is_small, rp, rp_large)


def compute_position_bias(rel_emb, seq_len):
    # rel_emb: [REL_BUCKETS, NUM_HEADS] -> bias [H, S, S]
    ctx = jnp.arange(seq_len)[:, None]
    mem = jnp.arange(seq_len)[None, :]
    buckets = _relative_position_bucket(mem - ctx, REL_BUCKETS, REL_MAX_DIST)
    values = rel_emb[buckets]                    # [S, S, H]
    return jnp.transpose(values, (2, 0, 1))      # [H, S, S]


# ----------------------------- parameter init --------------------------------
def init_params(key):
    def nrm(k, shape):
        return jax.random.normal(k, shape, dtype=jnp.float32) * 0.02

    keys = jax.random.split(key, 2 + NUM_LAYERS)
    wqkv, wo, wi0, wi1, wffo = [], [], [], [], []
    for li in range(NUM_LAYERS):
        lk = jax.random.split(keys[2 + li], 7)
        wq = nrm(lk[0], (D_MODEL, INNER))
        wk = nrm(lk[1], (D_MODEL, INNER))
        wv = nrm(lk[2], (D_MODEL, INNER))
        wqkv.append(jnp.concatenate([wq, wk, wv], axis=1))   # [D, 3*INNER]
        wo.append(nrm(lk[3], (INNER, D_MODEL)))
        wi0.append(nrm(lk[4], (D_MODEL, D_FF)))
        wi1.append(nrm(lk[5], (D_MODEL, D_FF)))
        wffo.append(nrm(lk[6], (D_FF, D_MODEL)))

    return {
        "embed": nrm(keys[0], (VOCAB, D_MODEL)),
        "rel_bias": nrm(keys[1], (REL_BUCKETS, NUM_HEADS)),
        "ln1": jnp.ones((NUM_LAYERS, 1, D_MODEL), jnp.float32),
        "ln2": jnp.ones((NUM_LAYERS, 1, D_MODEL), jnp.float32),
        "final_ln": jnp.ones((1, D_MODEL), jnp.float32),
        "wqkv": jnp.stack(wqkv),    # [L, D, 3*INNER]
        "wo": jnp.stack(wo),        # [L, INNER, D]
        "wi0": jnp.stack(wi0),      # [L, D, D_FF]
        "wi1": jnp.stack(wi1),      # [L, D, D_FF]
        "wffo": jnp.stack(wffo),    # [L, D_FF, D]
    }


def _cost_estimate(B, S):
    L, H, D, DK, DF, IN = NUM_LAYERS, NUM_HEADS, D_MODEL, D_KV, D_FF, INNER
    per_bl = (2 * S * D * 3 * IN            # fused QKV
              + 2 * H * S * S * DK * 2      # QK^T + PV
              + 2 * S * IN * D              # output projection
              + 2 * 2 * S * D * DF          # wi0, wi1
              + 2 * S * DF * D)             # ffn out
    flops = B * L * per_bl
    transcendentals = B * L * (S * DF + H * S * S)      # tanh + exp
    weight_bytes = L * (D * 3 * IN + IN * D + 2 * D * DF + DF * D) * 2
    act_bytes = 2 * B * S * D * 4 + B * S * 4 + H * S * S * 4
    return pl.CostEstimate(flops=flops, transcendentals=transcendentals,
                           bytes_accessed=weight_bytes + act_bytes)


# ----------------------------- forward (T5 encoder) ---------------------------
@jax.jit
def ankh_for_embedding(params, input_ids, attention_mask):
    B, S = input_ids.shape
    L = NUM_LAYERS
    bf16 = jnp.bfloat16

    # Whole batch per grid step: matmul M = B*S; single kernel launch.
    # (On v7x with larger B, set BT = B // 2 to shard across the 2 TensorCores.)
    BT = B
    grid = (B // BT,)

    # embedding lookup (glue)
    hidden = params["embed"][input_ids].astype(jnp.float32)            # [B, S, D]
    # extended attention mask (additive, fp32), shared relative-position bias
    mask_add = ((1.0 - attention_mask.astype(jnp.float32)) * NEG_INF)[:, None, :]  # [B,1,S]
    pos_bias = compute_position_bias(params["rel_bias"], S)            # [H, S, S]

    args = (
        hidden, mask_add, pos_bias,
        params["ln1"], params["wqkv"].astype(bf16), params["wo"].astype(bf16),
        params["ln2"], params["wi0"].astype(bf16), params["wi1"].astype(bf16),
        params["wffo"].astype(bf16),
        params["final_ln"],
    )

    in_specs = [
        pl.BlockSpec((BT, S, D_MODEL), lambda b: (b, 0, 0)),         # hidden
        pl.BlockSpec((BT, 1, S), lambda b: (b, 0, 0)),               # mask
        pl.BlockSpec((NUM_HEADS, S, S), lambda b: (0, 0, 0)),        # position bias
        pl.BlockSpec((L, 1, D_MODEL), lambda b: (0, 0, 0)),          # ln1
        pl.BlockSpec((L, D_MODEL, 3 * INNER), lambda b: (0, 0, 0)),  # wqkv
        pl.BlockSpec((L, INNER, D_MODEL), lambda b: (0, 0, 0)),      # wo
        pl.BlockSpec((L, 1, D_MODEL), lambda b: (0, 0, 0)),          # ln2
        pl.BlockSpec((L, D_MODEL, D_FF), lambda b: (0, 0, 0)),       # wi0
        pl.BlockSpec((L, D_MODEL, D_FF), lambda b: (0, 0, 0)),       # wi1
        pl.BlockSpec((L, D_FF, D_MODEL), lambda b: (0, 0, 0)),       # wffo
        pl.BlockSpec((1, D_MODEL), lambda b: (0, 0)),                # final ln
    ]

    out = pl.pallas_call(
        encoder_kernel,
        out_shape=jax.ShapeDtypeStruct((B, S, D_MODEL), jnp.float32),
        grid=grid,
        in_specs=in_specs,
        out_specs=pl.BlockSpec((BT, S, D_MODEL), lambda b: (b, 0, 0)),
        compiler_params=pltpu.CompilerParams(
            dimension_semantics=("parallel",)),
        cost_estimate=_cost_estimate(B, S),
    )(*args)
    return out   # last_hidden_state [B, S, D]


# ----------------------------- main ------------------------------------------
if __name__ == "__main__":
    key = jax.random.PRNGKey(0)
    pkey, ikey = jax.random.split(key)

    params = init_params(pkey)

    B, S = 2, 8
    input_ids = jax.random.randint(ikey, (B, S), 0, VOCAB, dtype=jnp.int32)
    attention_mask = jnp.ones((B, S), dtype=jnp.float32)
    attention_mask = attention_mask.at[1, 6:].set(0.0)   # ragged second sequence

    out = ankh_for_embedding(params, input_ids, attention_mask)
    out = jax.block_until_ready(out)

    assert out.shape == (B, S, D_MODEL)
    assert bool(jnp.all(jnp.isfinite(out)))
    print("KERNEL_OK")
</pallas_src>

<mosaic_0001>
module attributes {stable_mosaic.version = 11 : i64} {
  func.func @encoder_kernel(%arg0: i32, %arg1: memref<2x8x32xf32, #tpu.memory_space<vmem>>, %arg2: memref<2x1x8xf32, #tpu.memory_space<vmem>>, %arg3: memref<2x8x8xf32, #tpu.memory_space<vmem>>, %arg4: memref<2x1x32xf32, #tpu.memory_space<vmem>>, %arg5: memref<2x32x96xbf16, #tpu.memory_space<vmem>>, %arg6: memref<2x32x32xbf16, #tpu.memory_space<vmem>>, %arg7: memref<2x1x32xf32, #tpu.memory_space<vmem>>, %arg8: memref<2x32x64xbf16, #tpu.memory_space<vmem>>, %arg9: memref<2x32x64xbf16, #tpu.memory_space<vmem>>, %arg10: memref<2x64x32xbf16, #tpu.memory_space<vmem>>, %arg11: memref<1x32xf32, #tpu.memory_space<vmem>>, %arg12: memref<2x8x32xf32, #tpu.memory_space<vmem>>) attributes {dimension_semantics = [#tpu.dimension_semantics<parallel>], iteration_bounds = array<i64: 1>, scalar_prefetch = 0 : i64, scratch_operands = 0 : i64, tpu.core_type = #tpu.core_type<tc>, window_params = [{transform_indices = @transform_0, window_bounds = array<i64: 2, 8, 32>}, {transform_indices = @transform_1, window_bounds = array<i64: 2, 1, 8>}, {pipeline_mode = #tpu.pipeline_mode<synchronous>, transform_indices = @transform_2, window_bounds = array<i64: 2, 8, 8>}, {pipeline_mode = #tpu.pipeline_mode<synchronous>, transform_indices = @transform_3, window_bounds = array<i64: 2, 1, 32>}, {pipeline_mode = #tpu.pipeline_mode<synchronous>, transform_indices = @transform_4, window_bounds = array<i64: 2, 32, 96>}, {pipeline_mode = #tpu.pipeline_mode<synchronous>, transform_indices = @transform_5, window_bounds = array<i64: 2, 32, 32>}, {pipeline_mode = #tpu.pipeline_mode<synchronous>, transform_indices = @transform_6, window_bounds = array<i64: 2, 1, 32>}, {pipeline_mode = #tpu.pipeline_mode<synchronous>, transform_indices = @transform_7, window_bounds = array<i64: 2, 32, 64>}, {pipeline_mode = #tpu.pipeline_mode<synchronous>, transform_indices = @transform_8, window_bounds = array<i64: 2, 32, 64>}, {pipeline_mode = #tpu.pipeline_mode<synchronous>, transform_indices = @transform_9, window_bounds = array<i64: 2, 64, 32>}, {pipeline_mode = #tpu.pipeline_mode<synchronous>, transform_indices = @transform_10, window_bounds = array<i64: 1, 32>}, {transform_indices = @transform_11, window_bounds = array<i64: 2, 8, 32>}]} {
    %c0 = arith.constant 0 : index
    %c0_0 = arith.constant 0 : index
    %c0_1 = arith.constant 0 : index
    %0 = vector.load %arg1[%c0, %c0_0, %c0_1] : memref<2x8x32xf32, #tpu.memory_space<vmem>>, vector<2x8x32xf32>
    %1 = vector.shape_cast %0 : vector<2x8x32xf32> to vector<16x32xf32>
    %c0_2 = arith.constant 0 : index
    %c0_3 = arith.constant 0 : index
    %c0_4 = arith.constant 0 : index
    %2 = vector.load %arg2[%c0_2, %c0_3, %c0_4] : memref<2x1x8xf32, #tpu.memory_space<vmem>>, vector<2x1x8xf32>
    %c0_5 = arith.constant 0 : index
    %c0_6 = arith.constant 0 : index
    %c0_7 = arith.constant 0 : index
    %3 = vector.load %arg3[%c0_5, %c0_6, %c0_7] : memref<2x8x8xf32, #tpu.memory_space<vmem>>, vector<1x8x8xf32>
    %4 = vector.shape_cast %3 : vector<1x8x8xf32> to vector<8x8xf32>
    %5 = vector.shape_cast %4 : vector<8x8xf32> to vector<1x8x8xf32>
    %6 = vector.broadcast %5 : vector<1x8x8xf32> to vector<2x8x8xf32>
    %7 = vector.broadcast %2 : vector<2x1x8xf32> to vector<2x8x8xf32>
    %8 = arith.addf %6, %7 : vector<2x8x8xf32>
    %c1 = arith.constant 1 : index
    %c0_8 = arith.constant 0 : index
    %c0_9 = arith.constant 0 : index
    %9 = vector.load %arg3[%c1, %c0_8, %c0_9] : memref<2x8x8xf32, #tpu.memory_space<vmem>>, vector<1x8x8xf32>
    %10 = vector.shape_cast %9 : vector<1x8x8xf32> to vector<8x8xf32>
    %11 = vector.shape_cast %10 : vector<8x8xf32> to vector<1x8x8xf32>
    %12 = vector.broadcast %11 : vector<1x8x8xf32> to vector<2x8x8xf32>
    %13 = vector.broadcast %2 : vector<2x1x8xf32> to vector<2x8x8xf32>
    %14 = arith.addf %12, %13 : vector<2x8x8xf32>
    %c0_10 = arith.constant 0 : index
    %c0_11 = arith.constant 0 : index
    %c0_12 = arith.constant 0 : index
    %15 = vector.load %arg4[%c0_10, %c0_11, %c0_12] : memref<2x1x32xf32, #tpu.memory_space<vmem>>, vector<1x1x32xf32>
    %16 = vector.shape_cast %15 : vector<1x1x32xf32> to vector<1x32xf32>
    %17 = arith.mulf %1, %1 : vector<16x32xf32>
    %cst = arith.constant dense<0.000000e+00> : vector<16xf32>
    %18 = vector.multi_reduction <add>, %17, %cst [1] : vector<16x32xf32> to vector<16xf32>
    %19 = vector.shape_cast %18 : vector<16xf32> to vector<16x1xf32>
    %cst_13 = arith.constant 3.200000e+01 : f32
    %20 = vector.broadcast %cst_13 : f32 to vector<16x1xf32>
    %21 = arith.divf %19, %20 : vector<16x1xf32>
    %cst_14 = arith.constant 9.99999997E-7 : f32
    %22 = vector.broadcast %cst_14 : f32 to vector<16x1xf32>
    %23 = arith.addf %21, %22 : vector<16x1xf32>
    %24 = math.rsqrt %23 : vector<16x1xf32>
    %25 = vector.broadcast %24 : vector<16x1xf32> to vector<16x32xf32>
    %26 = arith.mulf %1, %25 : vector<16x32xf32>
    %27 = vector.broadcast %16 : vector<1x32xf32> to vector<16x32xf32>
    %28 = arith.mulf %26, %27 : vector<16x32xf32>
    %29 = arith.truncf %28 : vector<16x32xf32> to vector<16x32xbf16>
    %c0_15 = arith.constant 0 : index
    %c0_16 = arith.constant 0 : index
    %c0_17 = arith.constant 0 : index
    %30 = vector.load %arg5[%c0_15, %c0_16, %c0_17] : memref<2x32x96xbf16, #tpu.memory_space<vmem>>, vector<1x32x96xbf16>
    %31 = vector.shape_cast %30 : vector<1x32x96xbf16> to vector<32x96xbf16>
    %cst_18 = arith.constant dense<0.000000e+00> : vector<16x96xf32>
    %32 = tpu.matmul %29, %31, %cst_18 {dimension_numbers = #tpu.dot_dimension_numbers<[1], [0], [0], [1], [0, 0, 1, 1], [], []>} : vector<16x32xbf16>, vector<32x96xbf16>, vector<16x96xf32> -> vector<16x96xf32>
    %33 = arith.truncf %32 : vector<16x96xf32> to vector<16x96xbf16>
    %34 = vector.extract_strided_slice %33 {offsets = [0, 0], sizes = [16, 16], strides = [1, 1]} : vector<16x96xbf16> to vector<16x16xbf16>
    %35 = vector.shape_cast %34 : vector<16x16xbf16> to vector<2x8x16xbf16>
    %36 = vector.extract_strided_slice %33 {offsets = [0, 32], sizes = [16, 16], strides = [1, 1]} : vector<16x96xbf16> to vector<16x16xbf16>
    %37 = vector.shape_cast %36 : vector<16x16xbf16> to vector<2x8x16xbf16>
    %38 = vector.extract_strided_slice %33 {offsets = [0, 64], sizes = [16, 16], strides = [1, 1]} : vector<16x96xbf16> to vector<16x16xbf16>
    %39 = vector.shape_cast %38 : vector<16x16xbf16> to vector<2x8x16xbf16>
    "tpu.trace_start"() <{level = 10 : i32, message = "bqd,bkd->bqk"}> : () -> ()
    %cst_19 = arith.constant dense<0.000000e+00> : vector<2x8x8xf32>
    %40 = tpu.matmul %35, %37, %cst_19 {dimension_numbers = #tpu.dot_dimension_numbers<[2], [2], [1], [1], [0, 0, 0, 1, 1, 1], [0], [0]>} : vector<2x8x16xbf16>, vector<2x8x16xbf16>, vector<2x8x8xf32> -> vector<2x8x8xf32>
    "tpu.trace_stop"() : () -> ()
    %41 = arith.addf %40, %8 : vector<2x8x8xf32>
    %cst_20 = arith.constant dense<0xFF800000> : vector<2x8xf32>
    %42 = vector.multi_reduction <maximumf>, %41, %cst_20 [2] : vector<2x8x8xf32> to vector<2x8xf32>
    %43 = vector.shape_cast %42 : vector<2x8xf32> to vector<2x8x1xf32>
    %44 = vector.broadcast %43 : vector<2x8x1xf32> to vector<2x8x8xf32>
    %45 = arith.subf %41, %44 : vector<2x8x8xf32>
    %46 = math.exp %45 : vector<2x8x8xf32>
    %cst_21 = arith.constant dense<0.000000e+00> : vector<2x8xf32>
    %47 = vector.multi_reduction <add>, %46, %cst_21 [2] : vector<2x8x8xf32> to vector<2x8xf32>
    %48 = vector.shape_cast %47 : vector<2x8xf32> to vector<2x8x1xf32>
    %49 = tpu.reciprocal %48 {approx = true} : vector<2x8x1xf32> -> vector<2x8x1xf32>
    %50 = vector.broadcast %49 : vector<2x8x1xf32> to vector<2x8x8xf32>
    %51 = arith.mulf %46, %50 : vector<2x8x8xf32>
    %52 = arith.truncf %51 : vector<2x8x8xf32> to vector<2x8x8xbf16>
    "tpu.trace_start"() <{level = 10 : i32, message = "bqk,bkd->bqd"}> : () -> ()
    %cst_22 = arith.constant dense<0.000000e+00> : vector<2x8x16xf32>
    %53 = tpu.matmul %52, %39, %cst_22 {dimension_numbers = #tpu.dot_dimension_numbers<[2], [1], [1], [2], [0, 0, 0, 1, 1, 2], [0], [0]>} : vector<2x8x8xbf16>, vector<2x8x16xbf16>, vector<2x8x16xf32> -> vector<2x8x16xf32>
    "tpu.trace_stop"() : () -> ()
    %54 = vector.extract_strided_slice %33 {offsets = [0, 16], sizes = [16, 16], strides = [1, 1]} : vector<16x96xbf16> to vector<16x16xbf16>
    %55 = vector.shape_cast %54 : vector<16x16xbf16> to vector<2x8x16xbf16>
    %56 = vector.extract_strided_slice %33 {offsets = [0, 48], sizes = [16, 16], strides = [1, 1]} : vector<16x96xbf16> to vector<16x16xbf16>
    %57 = vector.shape_cast %56 : vector<16x16xbf16> to vector<2x8x16xbf16>
    %58 = vector.extract_strided_slice %33 {offsets = [0, 80], sizes = [16, 16], strides = [1, 1]} : vector<16x96xbf16> to vector<16x16xbf16>
    %59 = vector.shape_cast %58 : vector<16x16xbf16> to vector<2x8x16xbf16>
    "tpu.trace_start"() <{level = 10 : i32, message = "bqd,bkd->bqk"}> : () -> ()
    %cst_23 = arith.constant dense<0.000000e+00> : vector<2x8x8xf32>
    %60 = tpu.matmul %55, %57, %cst_23 {dimension_numbers = #tpu.dot_dimension_numbers<[2], [2], [1], [1], [0, 0, 0, 1, 1, 1], [0], [0]>} : vector<2x8x16xbf16>, vector<2x8x16xbf16>, vector<2x8x8xf32> -> vector<2x8x8xf32>
    "tpu.trace_stop"() : () -> ()
    %61 = arith.addf %60, %14 : vector<2x8x8xf32>
    %cst_24 = arith.constant dense<0xFF800000> : vector<2x8xf32>
    %62 = vector.multi_reduction <maximumf>, %61, %cst_24 [2] : vector<2x8x8xf32> to vector<2x8xf32>
    %63 = vector.shape_cast %62 : vector<2x8xf32> to vector<2x8x1xf32>
    %64 = vector.broadcast %63 : vector<2x8x1xf32> to vector<2x8x8xf32>
    %65 = arith.subf %61, %64 : vector<2x8x8xf32>
    %66 = math.exp %65 : vector<2x8x8xf32>
    %cst_25 = arith.constant dense<0.000000e+00> : vector<2x8xf32>
    %67 = vector.multi_reduction <add>, %66, %cst_25 [2] : vector<2x8x8xf32> to vector<2x8xf32>
    %68 = vector.shape_cast %67 : vector<2x8xf32> to vector<2x8x1xf32>
    %69 = tpu.reciprocal %68 {approx = true} : vector<2x8x1xf32> -> vector<2x8x1xf32>
    %70 = vector.broadcast %69 : vector<2x8x1xf32> to vector<2x8x8xf32>
    %71 = arith.mulf %66, %70 : vector<2x8x8xf32>
    %72 = arith.truncf %71 : vector<2x8x8xf32> to vector<2x8x8xbf16>
    "tpu.trace_start"() <{level = 10 : i32, message = "bqk,bkd->bqd"}> : () -> ()
    %cst_26 = arith.constant dense<0.000000e+00> : vector<2x8x16xf32>
    %73 = tpu.matmul %72, %59, %cst_26 {dimension_numbers = #tpu.dot_dimension_numbers<[2], [1], [1], [2], [0, 0, 0, 1, 1, 2], [0], [0]>} : vector<2x8x8xbf16>, vector<2x8x16xbf16>, vector<2x8x16xf32> -> vector<2x8x16xf32>
    "tpu.trace_stop"() : () -> ()
    %74 = tpu.concatenate %53, %73 in 2 : vector<2x8x16xf32>, vector<2x8x16xf32> -> vector<2x8x32xf32>
    %75 = vector.shape_cast %74 : vector<2x8x32xf32> to vector<16x32xf32>
    %76 = arith.truncf %75 : vector<16x32xf32> to vector<16x32xbf16>
    %c0_27 = arith.constant 0 : index
    %c0_28 = arith.constant 0 : index
    %c0_29 = arith.constant 0 : index
    %77 = vector.load %arg6[%c0_27, %c0_28, %c0_29] : memref<2x32x32xbf16, #tpu.memory_space<vmem>>, vector<1x32x32xbf16>
    %78 = vector.shape_cast %77 : vector<1x32x32xbf16> to vector<32x32xbf16>
    %cst_30 = arith.constant dense<0.000000e+00> : vector<16x32xf32>
    %79 = tpu.matmul %76, %78, %cst_30 {dimension_numbers = #tpu.dot_dimension_numbers<[1], [0], [0], [1], [0, 0, 1, 1], [], []>} : vector<16x32xbf16>, vector<32x32xbf16>, vector<16x32xf32> -> vector<16x32xf32>
    %80 = arith.addf %1, %79 : vector<16x32xf32>
    %c0_31 = arith.constant 0 : index
    %c0_32 = arith.constant 0 : index
    %c0_33 = arith.constant 0 : index
    %81 = vector.load %arg7[%c0_31, %c0_32, %c0_33] : memref<2x1x32xf32, #tpu.memory_space<vmem>>, vector<1x1x32xf32>
    %82 = vector.shape_cast %81 : vector<1x1x32xf32> to vector<1x32xf32>
    %83 = arith.mulf %80, %80 : vector<16x32xf32>
    %cst_34 = arith.constant dense<0.000000e+00> : vector<16xf32>
    %84 = vector.multi_reduction <add>, %83, %cst_34 [1] : vector<16x32xf32> to vector<16xf32>
    %85 = vector.shape_cast %84 : vector<16xf32> to vector<16x1xf32>
    %cst_35 = arith.constant 3.200000e+01 : f32
    %86 = vector.broadcast %cst_35 : f32 to vector<16x1xf32>
    %87 = arith.divf %85, %86 : vector<16x1xf32>
    %cst_36 = arith.constant 9.99999997E-7 : f32
    %88 = vector.broadcast %cst_36 : f32 to vector<16x1xf32>
    %89 = arith.addf %87, %88 : vector<16x1xf32>
    %90 = math.rsqrt %89 : vector<16x1xf32>
    %91 = vector.broadcast %90 : vector<16x1xf32> to vector<16x32xf32>
    %92 = arith.mulf %80, %91 : vector<16x32xf32>
    %93 = vector.broadcast %82 : vector<1x32xf32> to vector<16x32xf32>
    %94 = arith.mulf %92, %93 : vector<16x32xf32>
    %95 = arith.truncf %94 : vector<16x32xf32> to vector<16x32xbf16>
    %c0_37 = arith.constant 0 : index
    %c0_38 = arith.constant 0 : index
    %c0_39 = arith.constant 0 : index
    %96 = vector.load %arg8[%c0_37, %c0_38, %c0_39] : memref<2x32x64xbf16, #tpu.memory_space<vmem>>, vector<1x32x64xbf16>
    %97 = vector.shape_cast %96 : vector<1x32x64xbf16> to vector<32x64xbf16>
    %cst_40 = arith.constant dense<0.000000e+00> : vector<16x64xf32>
    %98 = tpu.matmul %95, %97, %cst_40 {dimension_numbers = #tpu.dot_dimension_numbers<[1], [0], [0], [1], [0, 0, 1, 1], [], []>} : vector<16x32xbf16>, vector<32x64xbf16>, vector<16x64xf32> -> vector<16x64xf32>
    %c0_41 = arith.constant 0 : index
    %c0_42 = arith.constant 0 : index
    %c0_43 = arith.constant 0 : index
    %99 = vector.load %arg9[%c0_41, %c0_42, %c0_43] : memref<2x32x64xbf16, #tpu.memory_space<vmem>>, vector<1x32x64xbf16>
    %100 = vector.shape_cast %99 : vector<1x32x64xbf16> to vector<32x64xbf16>
    %cst_44 = arith.constant dense<0.000000e+00> : vector<16x64xf32>
    %101 = tpu.matmul %95, %100, %cst_44 {dimension_numbers = #tpu.dot_dimension_numbers<[1], [0], [0], [1], [0, 0, 1, 1], [], []>} : vector<16x32xbf16>, vector<32x64xbf16>, vector<16x64xf32> -> vector<16x64xf32>
    %cst_45 = arith.constant 5.000000e-01 : f32
    %102 = vector.broadcast %cst_45 : f32 to vector<16x64xf32>
    %103 = arith.mulf %102, %98 : vector<16x64xf32>
    %cst_46 = arith.constant 4.471500e-02 : f32
    %104 = vector.broadcast %cst_46 : f32 to vector<16x64xf32>
    %105 = arith.mulf %104, %98 : vector<16x64xf32>
    %106 = arith.mulf %105, %98 : vector<16x64xf32>
    %107 = arith.mulf %106, %98 : vector<16x64xf32>
    %108 = arith.addf %98, %107 : vector<16x64xf32>
    %cst_47 = arith.constant 0.797884583 : f32
    %109 = vector.broadcast %cst_47 : f32 to vector<16x64xf32>
    %110 = arith.mulf %109, %108 : vector<16x64xf32>
    %111 = math.tanh %110 : vector<16x64xf32>
    %cst_48 = arith.constant 1.000000e+00 : f32
    %112 = vector.broadcast %cst_48 : f32 to vector<16x64xf32>
    %113 = arith.addf %112, %111 : vector<16x64xf32>
    %114 = arith.mulf %103, %113 : vector<16x64xf32>
    %115 = arith.mulf %114, %101 : vector<16x64xf32>
    %116 = arith.truncf %115 : vector<16x64xf32> to vector<16x64xbf16>
    %c0_49 = arith.constant 0 : index
    %c0_50 = arith.constant 0 : index
    %c0_51 = arith.constant 0 : index
    %117 = vector.load %arg10[%c0_49, %c0_50, %c0_51] : memref<2x64x32xbf16, #tpu.memory_space<vmem>>, vector<1x64x32xbf16>
    %118 = vector.shape_cast %117 : vector<1x64x32xbf16> to vector<64x32xbf16>
    %cst_52 = arith.constant dense<0.000000e+00> : vector<16x32xf32>
    %119 = tpu.matmul %116, %118, %cst_52 {dimension_numbers = #tpu.dot_dimension_numbers<[1], [0], [0], [1], [0, 0, 1, 1], [], []>} : vector<16x64xbf16>, vector<64x32xbf16>, vector<16x32xf32> -> vector<16x32xf32>
    %120 = arith.addf %80, %119 : vector<16x32xf32>
    %c1_53 = arith.constant 1 : index
    %c0_54 = arith.constant 0 : index
    %c0_55 = arith.constant 0 : index
    %121 = vector.load %arg4[%c1_53, %c0_54, %c0_55] : memref<2x1x32xf32, #tpu.memory_space<vmem>>, vector<1x1x32xf32>
    %122 = vector.shape_cast %121 : vector<1x1x32xf32> to vector<1x32xf32>
    %123 = arith.mulf %120, %120 : vector<16x32xf32>
    %cst_56 = arith.constant dense<0.000000e+00> : vector<16xf32>
    %124 = vector.multi_reduction <add>, %123, %cst_56 [1] : vector<16x32xf32> to vector<16xf32>
    %125 = vector.shape_cast %124 : vector<16xf32> to vector<16x1xf32>
    %cst_57 = arith.constant 3.200000e+01 : f32
    %126 = vector.broadcast %cst_57 : f32 to vector<16x1xf32>
    %127 = arith.divf %125, %126 : vector<16x1xf32>
    %cst_58 = arith.constant 9.99999997E-7 : f32
    %128 = vector.broadcast %cst_58 : f32 to vector<16x1xf32>
    %129 = arith.addf %127, %128 : vector<16x1xf32>
    %130 = math.rsqrt %129 : vector<16x1xf32>
    %131 = vector.broadcast %130 : vector<16x1xf32> to vector<16x32xf32>
    %132 = arith.mulf %120, %131 : vector<16x32xf32>
    %133 = vector.broadcast %122 : vector<1x32xf32> to vector<16x32xf32>
    %134 = arith.mulf %132, %133 : vector<16x32xf32>
    %135 = arith.truncf %134 : vector<16x32xf32> to vector<16x32xbf16>
    %c1_59 = arith.constant 1 : index
    %c0_60 = arith.constant 0 : index
    %c0_61 = arith.constant 0 : index
    %136 = vector.load %arg5[%c1_59, %c0_60, %c0_61] : memref<2x32x96xbf16, #tpu.memory_space<vmem>>, vector<1x32x96xbf16>
    %137 = vector.shape_cast %136 : vector<1x32x96xbf16> to vector<32x96xbf16>
    %cst_62 = arith.constant dense<0.000000e+00> : vector<16x96xf32>
    %138 = tpu.matmul %135, %137, %cst_62 {dimension_numbers = #tpu.dot_dimension_numbers<[1], [0], [0], [1], [0, 0, 1, 1], [], []>} : vector<16x32xbf16>, vector<32x96xbf16>, vector<16x96xf32> -> vector<16x96xf32>
    %139 = arith.truncf %138 : vector<16x96xf32> to vector<16x96xbf16>
    %140 = vector.extract_strided_slice %139 {offsets = [0, 0], sizes = [16, 16], strides = [1, 1]} : vector<16x96xbf16> to vector<16x16xbf16>
    %141 = vector.shape_cast %140 : vector<16x16xbf16> to vector<2x8x16xbf16>
    %142 = vector.extract_strided_slice %139 {offsets = [0, 32], sizes = [16, 16], strides = [1, 1]} : vector<16x96xbf16> to vector<16x16xbf16>
    %143 = vector.shape_cast %142 : vector<16x16xbf16> to vector<2x8x16xbf16>
    %144 = vector.extract_strided_slice %139 {offsets = [0, 64], sizes = [16, 16], strides = [1, 1]} : vector<16x96xbf16> to vector<16x16xbf16>
    %145 = vector.shape_cast %144 : vector<16x16xbf16> to vector<2x8x16xbf16>
    "tpu.trace_start"() <{level = 10 : i32, message = "bqd,bkd->bqk"}> : () -> ()
    %cst_63 = arith.constant dense<0.000000e+00> : vector<2x8x8xf32>
    %146 = tpu.matmul %141, %143, %cst_63 {dimension_numbers = #tpu.dot_dimension_numbers<[2], [2], [1], [1], [0, 0, 0, 1, 1, 1], [0], [0]>} : vector<2x8x16xbf16>, vector<2x8x16xbf16>, vector<2x8x8xf32> -> vector<2x8x8xf32>
    "tpu.trace_stop"() : () -> ()
    %147 = arith.addf %146, %8 : vector<2x8x8xf32>
    %cst_64 = arith.constant dense<0xFF800000> : vector<2x8xf32>
    %148 = vector.multi_reduction <maximumf>, %147, %cst_64 [2] : vector<2x8x8xf32> to vector<2x8xf32>
    %149 = vector.shape_cast %148 : vector<2x8xf32> to vector<2x8x1xf32>
    %150 = vector.broadcast %149 : vector<2x8x1xf32> to vector<2x8x8xf32>
    %151 = arith.subf %147, %150 : vector<2x8x8xf32>
    %152 = math.exp %151 : vector<2x8x8xf32>
    %cst_65 = arith.constant dense<0.000000e+00> : vector<2x8xf32>
    %153 = vector.multi_reduction <add>, %152, %cst_65 [2] : vector<2x8x8xf32> to vector<2x8xf32>
    %154 = vector.shape_cast %153 : vector<2x8xf32> to vector<2x8x1xf32>
    %155 = tpu.reciprocal %154 {approx = true} : vector<2x8x1xf32> -> vector<2x8x1xf32>
    %156 = vector.broadcast %155 : vector<2x8x1xf32> to vector<2x8x8xf32>
    %157 = arith.mulf %152, %156 : vector<2x8x8xf32>
    %158 = arith.truncf %157 : vector<2x8x8xf32> to vector<2x8x8xbf16>
    "tpu.trace_start"() <{level = 10 : i32, message = "bqk,bkd->bqd"}> : () -> ()
    %cst_66 = arith.constant dense<0.000000e+00> : vector<2x8x16xf32>
    %159 = tpu.matmul %158, %145, %cst_66 {dimension_numbers = #tpu.dot_dimension_numbers<[2], [1], [1], [2], [0, 0, 0, 1, 1, 2], [0], [0]>} : vector<2x8x8xbf16>, vector<2x8x16xbf16>, vector<2x8x16xf32> -> vector<2x8x16xf32>
    "tpu.trace_stop"() : () -> ()
    %160 = vector.extract_strided_slice %139 {offsets = [0, 16], sizes = [16, 16], strides = [1, 1]} : vector<16x96xbf16> to vector<16x16xbf16>
    %161 = vector.shape_cast %160 : vector<16x16xbf16> to vector<2x8x16xbf16>
    %162 = vector.extract_strided_slice %139 {offsets = [0, 48], sizes = [16, 16], strides = [1, 1]} : vector<16x96xbf16> to vector<16x16xbf16>
    %163 = vector.shape_cast %162 : vector<16x16xbf16> to vector<2x8x16xbf16>
    %164 = vector.extract_strided_slice %139 {offsets = [0, 80], sizes = [16, 16], strides = [1, 1]} : vector<16x96xbf16> to vector<16x16xbf16>
    %165 = vector.shape_cast %164 : vector<16x16xbf16> to vector<2x8x16xbf16>
    "tpu.trace_start"() <{level = 10 : i32, message = "bqd,bkd->bqk"}> : () -> ()
    %cst_67 = arith.constant dense<0.000000e+00> : vector<2x8x8xf32>
    %166 = tpu.matmul %161, %163, %cst_67 {dimension_numbers = #tpu.dot_dimension_numbers<[2], [2], [1], [1], [0, 0, 0, 1, 1, 1], [0], [0]>} : vector<2x8x16xbf16>, vector<2x8x16xbf16>, vector<2x8x8xf32> -> vector<2x8x8xf32>
    "tpu.trace_stop"() : () -> ()
    %167 = arith.addf %166, %14 : vector<2x8x8xf32>
    %cst_68 = arith.constant dense<0xFF800000> : vector<2x8xf32>
    %168 = vector.multi_reduction <maximumf>, %167, %cst_68 [2] : vector<2x8x8xf32> to vector<2x8xf32>
    %169 = vector.shape_cast %168 : vector<2x8xf32> to vector<2x8x1xf32>
    %170 = vector.broadcast %169 : vector<2x8x1xf32> to vector<2x8x8xf32>
    %171 = arith.subf %167, %170 : vector<2x8x8xf32>
    %172 = math.exp %171 : vector<2x8x8xf32>
    %cst_69 = arith.constant dense<0.000000e+00> : vector<2x8xf32>
    %173 = vector.multi_reduction <add>, %172, %cst_69 [2] : vector<2x8x8xf32> to vector<2x8xf32>
    %174 = vector.shape_cast %173 : vector<2x8xf32> to vector<2x8x1xf32>
    %175 = tpu.reciprocal %174 {approx = true} : vector<2x8x1xf32> -> vector<2x8x1xf32>
    %176 = vector.broadcast %175 : vector<2x8x1xf32> to vector<2x8x8xf32>
    %177 = arith.mulf %172, %176 : vector<2x8x8xf32>
    %178 = arith.truncf %177 : vector<2x8x8xf32> to vector<2x8x8xbf16>
    "tpu.trace_start"() <{level = 10 : i32, message = "bqk,bkd->bqd"}> : () -> ()
    %cst_70 = arith.constant dense<0.000000e+00> : vector<2x8x16xf32>
    %179 = tpu.matmul %178, %165, %cst_70 {dimension_numbers = #tpu.dot_dimension_numbers<[2], [1], [1], [2], [0, 0, 0, 1, 1, 2], [0], [0]>} : vector<2x8x8xbf16>, vector<2x8x16xbf16>, vector<2x8x16xf32> -> vector<2x8x16xf32>
    "tpu.trace_stop"() : () -> ()
    %180 = tpu.concatenate %159, %179 in 2 : vector<2x8x16xf32>, vector<2x8x16xf32> -> vector<2x8x32xf32>
    %181 = vector.shape_cast %180 : vector<2x8x32xf32> to vector<16x32xf32>
    %182 = arith.truncf %181 : vector<16x32xf32> to vector<16x32xbf16>
    %c1_71 = arith.constant 1 : index
    %c0_72 = arith.constant 0 : index
    %c0_73 = arith.constant 0 : index
    %183 = vector.load %arg6[%c1_71, %c0_72, %c0_73] : memref<2x32x32xbf16, #tpu.memory_space<vmem>>, vector<1x32x32xbf16>
    %184 = vector.shape_cast %183 : vector<1x32x32xbf16> to vector<32x32xbf16>
    %cst_74 = arith.constant dense<0.000000e+00> : vector<16x32xf32>
    %185 = tpu.matmul %182, %184, %cst_74 {dimension_numbers = #tpu.dot_dimension_numbers<[1], [0], [0], [1], [0, 0, 1, 1], [], []>} : vector<16x32xbf16>, vector<32x32xbf16>, vector<16x32xf32> -> vector<16x32xf32>
    %186 = arith.addf %120, %185 : vector<16x32xf32>
    %c1_75 = arith.constant 1 : index
    %c0_76 = arith.constant 0 : index
    %c0_77 = arith.constant 0 : index
    %187 = vector.load %arg7[%c1_75, %c0_76, %c0_77] : memref<2x1x32xf32, #tpu.memory_space<vmem>>, vector<1x1x32xf32>
    %188 = vector.shape_cast %187 : vector<1x1x32xf32> to vector<1x32xf32>
    %189 = arith.mulf %186, %186 : vector<16x32xf32>
    %cst_78 = arith.constant dense<0.000000e+00> : vector<16xf32>
    %190 = vector.multi_reduction <add>, %189, %cst_78 [1] : vector<16x32xf32> to vector<16xf32>
    %191 = vector.shape_cast %190 : vector<16xf32> to vector<16x1xf32>
    %cst_79 = arith.constant 3.200000e+01 : f32
    %192 = vector.broadcast %cst_79 : f32 to vector<16x1xf32>
    %193 = arith.divf %191, %192 : vector<16x1xf32>
    %cst_80 = arith.constant 9.99999997E-7 : f32
    %194 = vector.broadcast %cst_80 : f32 to vector<16x1xf32>
    %195 = arith.addf %193, %194 : vector<16x1xf32>
    %196 = math.rsqrt %195 : vector<16x1xf32>
    %197 = vector.broadcast %196 : vector<16x1xf32> to vector<16x32xf32>
    %198 = arith.mulf %186, %197 : vector<16x32xf32>
    %199 = vector.broadcast %188 : vector<1x32xf32> to vector<16x32xf32>
    %200 = arith.mulf %198, %199 : vector<16x32xf32>
    %201 = arith.truncf %200 : vector<16x32xf32> to vector<16x32xbf16>
    %c1_81 = arith.constant 1 : index
    %c0_82 = arith.constant 0 : index
    %c0_83 = arith.constant 0 : index
    %202 = vector.load %arg8[%c1_81, %c0_82, %c0_83] : memref<2x32x64xbf16, #tpu.memory_space<vmem>>, vector<1x32x64xbf16>
    %203 = vector.shape_cast %202 : vector<1x32x64xbf16> to vector<32x64xbf16>
    %cst_84 = arith.constant dense<0.000000e+00> : vector<16x64xf32>
    %204 = tpu.matmul %201, %203, %cst_84 {dimension_numbers = #tpu.dot_dimension_numbers<[1], [0], [0], [1], [0, 0, 1, 1], [], []>} : vector<16x32xbf16>, vector<32x64xbf16>, vector<16x64xf32> -> vector<16x64xf32>
    %c1_85 = arith.constant 1 : index
    %c0_86 = arith.constant 0 : index
    %c0_87 = arith.constant 0 : index
    %205 = vector.load %arg9[%c1_85, %c0_86, %c0_87] : memref<2x32x64xbf16, #tpu.memory_space<vmem>>, vector<1x32x64xbf16>
    %206 = vector.shape_cast %205 : vector<1x32x64xbf16> to vector<32x64xbf16>
    %cst_88 = arith.constant dense<0.000000e+00> : vector<16x64xf32>
    %207 = tpu.matmul %201, %206, %cst_88 {dimension_numbers = #tpu.dot_dimension_numbers<[1], [0], [0], [1], [0, 0, 1, 1], [], []>} : vector<16x32xbf16>, vector<32x64xbf16>, vector<16x64xf32> -> vector<16x64xf32>
    %cst_89 = arith.constant 5.000000e-01 : f32
    %208 = vector.broadcast %cst_89 : f32 to vector<16x64xf32>
    %209 = arith.mulf %208, %204 : vector<16x64xf32>
    %cst_90 = arith.constant 4.471500e-02 : f32
    %210 = vector.broadcast %cst_90 : f32 to vector<16x64xf32>
    %211 = arith.mulf %210, %204 : vector<16x64xf32>
    %212 = arith.mulf %211, %204 : vector<16x64xf32>
    %213 = arith.mulf %212, %204 : vector<16x64xf32>
    %214 = arith.addf %204, %213 : vector<16x64xf32>
    %cst_91 = arith.constant 0.797884583 : f32
    %215 = vector.broadcast %cst_91 : f32 to vector<16x64xf32>
    %216 = arith.mulf %215, %214 : vector<16x64xf32>
    %217 = math.tanh %216 : vector<16x64xf32>
    %cst_92 = arith.constant 1.000000e+00 : f32
    %218 = vector.broadcast %cst_92 : f32 to vector<16x64xf32>
    %219 = arith.addf %218, %217 : vector<16x64xf32>
    %220 = arith.mulf %209, %219 : vector<16x64xf32>
    %221 = arith.mulf %220, %207 : vector<16x64xf32>
    %222 = arith.truncf %221 : vector<16x64xf32> to vector<16x64xbf16>
    %c1_93 = arith.constant 1 : index
    %c0_94 = arith.constant 0 : index
    %c0_95 = arith.constant 0 : index
    %223 = vector.load %arg10[%c1_93, %c0_94, %c0_95] : memref<2x64x32xbf16, #tpu.memory_space<vmem>>, vector<1x64x32xbf16>
    %224 = vector.shape_cast %223 : vector<1x64x32xbf16> to vector<64x32xbf16>
    %cst_96 = arith.constant dense<0.000000e+00> : vector<16x32xf32>
    %225 = tpu.matmul %222, %224, %cst_96 {dimension_numbers = #tpu.dot_dimension_numbers<[1], [0], [0], [1], [0, 0, 1, 1], [], []>} : vector<16x64xbf16>, vector<64x32xbf16>, vector<16x32xf32> -> vector<16x32xf32>
    %226 = arith.addf %186, %225 : vector<16x32xf32>
    %c0_97 = arith.constant 0 : index
    %c0_98 = arith.constant 0 : index
    %227 = vector.load %arg11[%c0_97, %c0_98] : memref<1x32xf32, #tpu.memory_space<vmem>>, vector<1x32xf32>
    %228 = arith.mulf %226, %226 : vector<16x32xf32>
    %cst_99 = arith.constant dense<0.000000e+00> : vector<16xf32>
    %229 = vector.multi_reduction <add>, %228, %cst_99 [1] : vector<16x32xf32> to vector<16xf32>
    %230 = vector.shape_cast %229 : vector<16xf32> to vector<16x1xf32>
    %cst_100 = arith.constant 3.200000e+01 : f32
    %231 = vector.broadcast %cst_100 : f32 to vector<16x1xf32>
    %232 = arith.divf %230, %231 : vector<16x1xf32>
    %cst_101 = arith.constant 9.99999997E-7 : f32
    %233 = vector.broadcast %cst_101 : f32 to vector<16x1xf32>
    %234 = arith.addf %232, %233 : vector<16x1xf32>
    %235 = math.rsqrt %234 : vector<16x1xf32>
    %236 = vector.broadcast %235 : vector<16x1xf32> to vector<16x32xf32>
    %237 = arith.mulf %226, %236 : vector<16x32xf32>
    %238 = vector.broadcast %227 : vector<1x32xf32> to vector<16x32xf32>
    %239 = arith.mulf %237, %238 : vector<16x32xf32>
    %240 = vector.shape_cast %239 : vector<16x32xf32> to vector<2x8x32xf32>
    %c0_102 = arith.constant 0 : index
    %c0_103 = arith.constant 0 : index
    %c0_104 = arith.constant 0 : index
    %241 = vector.load %arg12[%c0_102, %c0_103, %c0_104] : memref<2x8x32xf32, #tpu.memory_space<vmem>>, vector<2x8x32xf32>
    tpu.vector_store %arg12[%c0_102, %c0_103, %c0_104], %240 {strides = array<i32>} : memref<2x8x32xf32, #tpu.memory_space<vmem>>, vector<2x8x32xf32>,
    return
  }
  func.func @transform_0(%arg0: i32) -> (i32, i32, i32) {
    %c0_i32 = arith.constant 0 : i32
    %c0_i32_0 = arith.constant 0 : i32
    %c0_i32_1 = arith.constant 0 : i32
    return %arg0, %c0_i32, %c0_i32_0 : i32, i32, i32
  }
  func.func @transform_1(%arg0: i32) -> (i32, i32, i32) {
    %c0_i32 = arith.constant 0 : i32
    %c0_i32_0 = arith.constant 0 : i32
    %c0_i32_1 = arith.constant 0 : i32
    return %arg0, %c0_i32, %c0_i32_0 : i32, i32, i32
  }
  func.func @transform_2(%arg0: i32) -> (i32, i32, i32) {
    %c0_i32 = arith.constant 0 : i32
    %c0_i32_0 = arith.constant 0 : i32
    %c0_i32_1 = arith.constant 0 : i32
    %c0_i32_2 = arith.constant 0 : i32
    return %c0_i32, %c0_i32_0, %c0_i32_1 : i32, i32, i32
  }
  func.func @transform_3(%arg0: i32) -> (i32, i32, i32) {
    %c0_i32 = arith.constant 0 : i32
    %c0_i32_0 = arith.constant 0 : i32
    %c0_i32_1 = arith.constant 0 : i32
    %c0_i32_2 = arith.constant 0 : i32
    return %c0_i32, %c0_i32_0, %c0_i32_1 : i32, i32, i32
  }
  func.func @transform_4(%arg0: i32) -> (i32, i32, i32) {
    %c0_i32 = arith.constant 0 : i32
    %c0_i32_0 = arith.constant 0 : i32
    %c0_i32_1 = arith.constant 0 : i32
    %c0_i32_2 = arith.constant 0 : i32
    return %c0_i32, %c0_i32_0, %c0_i32_1 : i32, i32, i32
  }
  func.func @transform_5(%arg0: i32) -> (i32, i32, i32) {
    %c0_i32 = arith.constant 0 : i32
    %c0_i32_0 = arith.constant 0 : i32
    %c0_i32_1 = arith.constant 0 : i32
    %c0_i32_2 = arith.constant 0 : i32
    return %c0_i32, %c0_i32_0, %c0_i32_1 : i32, i32, i32
  }
  func.func @transform_6(%arg0: i32) -> (i32, i32, i32) {
    %c0_i32 = arith.constant 0 : i32
    %c0_i32_0 = arith.constant 0 : i32
    %c0_i32_1 = arith.constant 0 : i32
    %c0_i32_2 = arith.constant 0 : i32
    return %c0_i32, %c0_i32_0, %c0_i32_1 : i32, i32, i32
  }
  func.func @transform_7(%arg0: i32) -> (i32, i32, i32) {
    %c0_i32 = arith.constant 0 : i32
    %c0_i32_0 = arith.constant 0 : i32
    %c0_i32_1 = arith.constant 0 : i32
    %c0_i32_2 = arith.constant 0 : i32
    return %c0_i32, %c0_i32_0, %c0_i32_1 : i32, i32, i32
  }
  func.func @transform_8(%arg0: i32) -> (i32, i32, i32) {
    %c0_i32 = arith.constant 0 : i32
    %c0_i32_0 = arith.constant 0 : i32
    %c0_i32_1 = arith.constant 0 : i32
    %c0_i32_2 = arith.constant 0 : i32
    return %c0_i32, %c0_i32_0, %c0_i32_1 : i32, i32, i32
  }
  func.func @transform_9(%arg0: i32) -> (i32, i32, i32) {
    %c0_i32 = arith.constant 0 : i32
    %c0_i32_0 = arith.constant 0 : i32
    %c0_i32_1 = arith.constant 0 : i32
    %c0_i32_2 = arith.constant 0 : i32
    return %c0_i32, %c0_i32_0, %c0_i32_1 : i32, i32, i32
  }
  func.func @transform_10(%arg0: i32) -> (i32, i32) {
    %c0_i32 = arith.constant 0 : i32
    %c0_i32_0 = arith.constant 0 : i32
    %c0_i32_1 = arith.constant 0 : i32
    return %c0_i32, %c0_i32_0 : i32, i32
  }
  func.func @transform_11(%arg0: i32) -> (i32, i32, i32) {
    %c0_i32 = arith.constant 0 : i32
    %c0_i32_0 = arith.constant 0 : i32
    %c0_i32_1 = arith.constant 0 : i32
    return %arg0, %c0_i32, %c0_i32_0 : i32, i32, i32
  }
}

</mosaic_0001>

<llo_original>
// kernel: ankh_for_embedding.1
$region0: #{ankh_for_embedding.1}
  #allocation0 [shape = 'u32[]', space=smem, size = 0x4, offset = 0x4, fixed_abs, tag = 'smem constant byte address 0x4 - core index']
  #allocation1 [shape = 'u32[144,128]{1,0:T(1,128)}', space=vmem, size = 0x12000, scoped, tag = 'internal scratch']
  %s0 = inlined_call_operand.vmem [shape: f32[2,8,32], index: 0, kind: input, shape index: {}]
  %s1 = inlined_call_operand.vmem [shape: f32[2,1,8], index: 1, kind: input, shape index: {}]
  %s2 = inlined_call_operand.vmem [shape: f32[2,8,8], index: 2, kind: input, shape index: {}]
  %s3 = inlined_call_operand.vmem [shape: f32[2,1,32], index: 3, kind: input, shape index: {}]
  %s4 = inlined_call_operand.vmem [shape: bf16[2,32,96], index: 4, kind: input, shape index: {}]
  %s5 = inlined_call_operand.vmem [shape: bf16[2,32,32], index: 5, kind: input, shape index: {}]
  %s6 = inlined_call_operand.vmem [shape: f32[2,1,32], index: 6, kind: input, shape index: {}]
  %s7 = inlined_call_operand.vmem [shape: bf16[2,32,64], index: 7, kind: input, shape index: {}]
  %s8 = inlined_call_operand.vmem [shape: bf16[2,32,64], index: 8, kind: input, shape index: {}]
  %s9 = inlined_call_operand.vmem [shape: bf16[2,64,32], index: 9, kind: input, shape index: {}]
  %s10 = inlined_call_operand.vmem [shape: f32[1,32], index: 10, kind: input, shape index: {}]
  %s11 = inlined_call_operand.hbm [shape: f32[2,8,32], index: 11, kind: output, shape index: {}]
  %s12 = sld [smem:[#allocation0]]
  $region54: #{ankh_for_embedding.1} parent=0
    _
  %s14 = ssub.s32 1, %s12
  %s15 = scalar_select 0, %s14, %s12
  $region1: #{ankh_for_embedding.1} parent=0
    #allocation2 [shape = 'u8[8192]{0}', space=vmem, size = 0x2000, scoped, tag = 'output window, operand 0, single buffered']
    #allocation3 [shape = 's32[1]{0}', space=sflag, size = 0x4, scoped, tag = 'scoped memory for ankh_for_embedding.1']
    %16 = vsyncpa [#allocation3], 0
    // Predicated region
    $region2: #{ankh_for_embedding.1} parent=1 // pred_check
      _
    $region3: #{ankh_for_embedding.1} parent=1 // pred_check_branch
      %18 = sbr.rel (0) target = $region5
    $region4: #{ankh_for_embedding.1} parent=1 // pred_region
      _
    $region5: #{ankh_for_embedding.1} parent=1 // pred_fallthru
      _
    // Predicated region
    $region6: #{ankh_for_embedding.1} parent=1 // pred_check
      _
    $region7: #{ankh_for_embedding.1} parent=1 // pred_check_branch
      %20 = sbr.rel (0) target = $region9
    $region8: #{ankh_for_embedding.1} parent=1 // pred_region
      _
    $region9: #{ankh_for_embedding.1} parent=1 // pred_fallthru
      _
    // Predicated region
    $region10: #{ankh_for_embedding.1} parent=1 // pred_check
      _
    $region11: #{ankh_for_embedding.1} parent=1 // pred_check_branch
      %22 = sbr.rel (0) target = $region13
    $region12: #{ankh_for_embedding.1} parent=1 // pred_region
      _
    $region13: #{ankh_for_embedding.1} parent=1 // pred_fallthru
      _
    // Predicated region
    $region14: #{ankh_for_embedding.1} parent=1 // pred_check
      _
    $region15: #{ankh_for_embedding.1} parent=1 // pred_check_branch
      %24 = sbr.rel (0) target = $region17
    $region16: #{ankh_for_embedding.1} parent=1 // pred_region
      _
    $region17: #{ankh_for_embedding.1} parent=1 // pred_fallthru
      _
    // Predicated region
    $region18: #{ankh_for_embedding.1} parent=1 // pred_check
      _
    $region19: #{ankh_for_embedding.1} parent=1 // pred_check_branch
      %26 = sbr.rel (0) target = $region21
    $region20: #{ankh_for_embedding.1} parent=1 // pred_region
      _
    $region21: #{ankh_for_embedding.1} parent=1 // pred_fallthru
      _
    // Predicated region
    $region22: #{ankh_for_embedding.1} parent=1 // pred_check
      _
    $region23: #{ankh_for_embedding.1} parent=1 // pred_check_branch
      %28 = sbr.rel (0) target = $region25
    $region24: #{ankh_for_embedding.1} parent=1 // pred_region
      _
    $region25: #{ankh_for_embedding.1} parent=1 // pred_fallthru
      _
    // Predicated region
    $region26: #{ankh_for_embedding.1} parent=1 // pred_check
      _
    $region27: #{ankh_for_embedding.1} parent=1 // pred_check_branch
      %30 = sbr.rel (0) target = $region29
    $region28: #{ankh_for_embedding.1} parent=1 // pred_region
      _
    $region29: #{ankh_for_embedding.1} parent=1 // pred_fallthru
      _
    // Predicated region
    $region30: #{ankh_for_embedding.1} parent=1 // pred_check
      _
    $region31: #{ankh_for_embedding.1} parent=1 // pred_check_branch
      %32 = sbr.rel (0) target = $region33
    $region32: #{ankh_for_embedding.1} parent=1 // pred_region
      _
    $region33: #{ankh_for_embedding.1} parent=1 // pred_fallthru
      _
    // Predicated region
    $region34: #{ankh_for_embedding.1} parent=1 // pred_check
      _
    $region35: #{ankh_for_embedding.1} parent=1 // pred_check_branch
      %34 = sbr.rel (0) target = $region37
    $region36: #{ankh_for_embedding.1} parent=1 // pred_region
      _
    $region37: #{ankh_for_embedding.1} parent=1 // pred_fallthru
      _
    // Predicated region
    $region38: #{ankh_for_embedding.1} parent=1 // pred_check
      _
    $region39: #{ankh_for_embedding.1} parent=1 // pred_check_branch
      %36 = sbr.rel (0) target = $region41
    $region40: #{ankh_for_embedding.1} parent=1 // pred_region
      _
    $region41: #{ankh_for_embedding.1} parent=1 // pred_fallthru
      _
    // Predicated region
    $region42: #{ankh_for_embedding.1} parent=1 // pred_check
      _
    $region43: #{ankh_for_embedding.1} parent=1 // pred_check_branch
      %38 = sbr.rel (0) target = $region45
    $region44: #{ankh_for_embedding.1} parent=1 // pred_region
      _
    $region45: #{ankh_for_embedding.1} parent=1 // pred_fallthru
      _
    %v40 = vld [vmem:[%s0] sm:$0xff]
    %v41 = vld [vmem:[%s0 + $0x8] sm:$0xff]
    %v42 = vld [vmem:[%s1] sm:$0x1]
    %v43 = vld [vmem:[%s1 + $0x1] sm:$0x1]
    %v44 = vld [vmem:[%s2] sm:$0xff]
    %v47 = vlaneseq
    %v48 = vshrl.u32 %v47, 7
    %v49 = vsub.s32 0, %v48
    %v50 = vrot.slane %v42, %v49
    %v51 = vlaneseq
    %v52 = vshrl.u32 %v51, 7
    %v53 = vsub.s32 0, %v52
    %v54 = vrot.slane %v43, %v53
    %v57 = vadd.f32 %v44, %v50
    %v58 = vadd.f32 %v44, %v54
    %s59 = scalar_lea.vmem %s2, 8
    %v60 = vld [vmem:[%s59] sm:$0xff]
    %v61 = vadd.f32 %v60, %v50
    %v62 = vadd.f32 %v60, %v54
    %v63 = vld [vmem:[%s3] sm:$0x1]
    %v64 = vmul.f32 %v40, %v40
    %v65 = vmul.f32 %v41, %v41
    %vm66 = vcmask 261120
    %v67 = vsel %vm66, %v64, 0.0
    %68 = vadd.xlane.f32.xlu0 %v67
    %v69 = vpop.xlane.xlu0 %68
    %v70 = vsel %vm66, %v65, 0.0
    %71 = vadd.xlane.f32.xlu0 %v70
    %v72 = vpop.xlane.xlu0 %71
    %v73 = vrcp.pop 32.0
    %v74 = vmul.f32 %v69, %v73
    %v75 = vmul.f32 %v72, %v73
    %v76 = vadd.f32 %v74, 1e-06
    %v77 = vadd.f32 %v75, 1e-06
    %v78 = vrsqrt.pop %v76
    %v79 = vrsqrt.pop %v77
    %v80 = vmul.f32 %v40, %v78
    %v81 = vmul.f32 %v41, %v79
    %v83 = vlaneseq
    %v84 = vshrl.u32 %v83, 7
    %v85 = vsub.s32 0, %v84
    %v86 = vrot.slane %v63, %v85
    %v88 = vmul.f32 %v80, %v86
    %v89 = vmul.f32 %v81, %v86
    %v90 = vpack.c.bf16 %v89, %v88
    %v91 = vld [vmem:[%s4] sm:$0xf]
    %v92 = vld [vmem:[%s4 + $0x4] sm:$0xf]
    %v93 = vld [vmem:[%s4 + $0x8] sm:$0xf]
    %v94 = vld [vmem:[%s4 + $0xc] sm:$0xf]
    %v99 = vunpack.c.l.b16 %v91
    %v100 = vunpack.c.l.b16 %v92
    %v101 = vunpack.c.l.b16 %v93
    %v102 = vunpack.c.l.b16 %v94
    %v103 = vpack.c.b16 %v100, %v99
    %v104 = vpack.c.b16 %v102, %v101
    %v108 = vsel %vm66, %v90, 0
    %110 = vmatprep.subr.bf16.mxu0 0
    %111 = vmatpush1.bf16.msra.mxu0 %v103
    %112 = vmatprep.subr.bf16.mxu0 0
    %113 = vmatpush1.bf16.msra.mxu0 %v104
    %114 = vmatprep.subr.bf16.mxu0 0
    %115 = vmatpush1.bf16.msra.mxu0 0
    %116 = vmatprep.subr.bf16.mxu0 0
    %117 = vmatpush1.bf16.msra.mxu0 0
    %118 = vmatprep.subr.bf16.mxu0 0
    %119 = vmatpush1.bf16.msra.mxu0 0
    %120 = vmatprep.subr.bf16.mxu0 0
    %121 = vmatpush1.bf16.msra.mxu0 0
    %122 = vmatprep.subr.bf16.mxu0 0
    %123 = vmatpush1.bf16.msra.mxu0 0
    %124 = vmatprep.subr.bf16.mxu0 0
    %125 = vmatpush1.bf16.msra.mxu0 0
    %126 = vmatprep.subr.bf16.mxu0 0
    %127 = vmatpush1.bf16.msra.mxu0 0
    %128 = vmatprep.subr.bf16.mxu0 0
    %129 = vmatpush1.bf16.msra.mxu0 0
    %130 = vmatprep.subr.bf16.mxu0 0
    %131 = vmatpush1.bf16.msra.mxu0 0
    %132 = vmatprep.subr.bf16.mxu0 0
    %133 = vmatpush1.bf16.msra.mxu0 0
    %134 = vmatprep.subr.bf16.mxu0 0
    %135 = vmatpush1.bf16.msra.mxu0 0
    %136 = vmatprep.subr.bf16.mxu0 0
    %137 = vmatpush1.bf16.msra.mxu0 0
    %138 = vmatprep.subr.bf16.mxu0 0
    %139 = vmatpush1.bf16.msra.mxu0 0
    %140 = vmatprep.subr.bf16.mxu0 0
    %141 = vmatpush1.bf16.msra.mxu0 0
    %142 = vmatprep.mubr.bf16.mxu0 0
    %143 = vmatmul.mubr.bf16.gmra.mrb[0].mxu0 %v108
    %v144 = vpop.f32.mrb[0].mxu0
    %v145 = vadd.f32 0.0, %v144
    %v146 = vpop.f32.mrb[0].mxu0
    %v147 = vpop.f32.mrb[0].mxu0
    %v148 = vadd.f32 0.0, %v147
    %v149 = vpop.f32.mrb[0].mxu0
    %150 = vdwg.mxu0
    %v151 = vpack.c.bf16 %v148, %v145
    %v153 = vunpack.c.l.b16 %v151
    %v154 = vunpack.c.h.b16 %v151
    %v155 = vpack.c.b16 %v153, %v153
    %v156 = vpack.c.b16 %v154, %v154
    %157 = vrot.lane.b32.xlu0 %v155, 96
    %v158 = vpop.permute.xlu0 %157
    %vm159 = vcmask 130048
    %v161 = vsel %vm159, %v155, 0
    %v164 = vsel %vm159, %v158, 0
    %166 = vmatprep.subr.bf16.mxu0 0
    %167 = vmatpush1.bf16.xpose.msra.mxu0 %v164
    %168 = vmatprep.subr.bf16.mxu0 0
    %169 = vmatpush1.bf16.xpose.msra.mxu0 0
    %170 = vmatprep.subr.bf16.mxu0 0
    %171 = vmatpush1.bf16.xpose.msra.mxu0 0
    %172 = vmatprep.subr.bf16.mxu0 0
    %173 = vmatpush1.bf16.xpose.msra.mxu0 0
    %174 = vmatprep.subr.bf16.mxu0 0
    %175 = vmatpush1.bf16.xpose.msra.mxu0 0
    %176 = vmatprep.subr.bf16.mxu0 0
    %177 = vmatpush1.bf16.xpose.msra.mxu0 0
    %178 = vmatprep.subr.bf16.mxu0 0
    %179 = vmatpush1.bf16.xpose.msra.mxu0 0
    %180 = vmatprep.subr.bf16.mxu0 0
    %181 = vmatpush1.bf16.xpose.msra.mxu0 0
    %182 = vmatprep.subr.bf16.mxu0 0
    %183 = vmatpush1.bf16.xpose.msra.mxu0 0
    %184 = vmatprep.subr.bf16.mxu0 0
    %185 = vmatpush1.bf16.xpose.msra.mxu0 0
    %186 = vmatprep.subr.bf16.mxu0 0
    %187 = vmatpush1.bf16.xpose.msra.mxu0 0
    %188 = vmatprep.subr.bf16.mxu0 0
    %189 = vmatpush1.bf16.xpose.msra.mxu0 0
    %190 = vmatprep.subr.bf16.mxu0 0
    %191 = vmatpush1.bf16.xpose.msra.mxu0 0
    %192 = vmatprep.subr.bf16.mxu0 0
    %193 = vmatpush1.bf16.xpose.msra.mxu0 0
    %194 = vmatprep.subr.bf16.mxu0 0
    %195 = vmatpush1.bf16.xpose.msra.mxu0 0
    %196 = vmatprep.subr.bf16.mxu0 0
    %197 = vmatpush1.bf16.xpose.msra.mxu0 0
    %198 = vmatprep.mubr.bf16.mxu0 0
    %199 = vmatmul.mubr.bf16.gmra.mrb[0].mxu0 %v161
    %v200 = vpop.f32.mrb[0].mxu0
    %v201 = vadd.f32 %v57, %v200
    %v202 = vpop.f32.mrb[0].mxu0
    %v203 = vpop.f32.mrb[0].mxu0
    %v204 = vpop.f32.mrb[0].mxu0
    %205 = vdwg.mxu0
    %206 = vrot.lane.b32.xlu0 %v156, 96
    %v207 = vpop.permute.xlu0 %206
    %v209 = vsel %vm159, %v156, 0
    %v212 = vsel %vm159, %v207, 0
    %214 = vmatprep.subr.bf16.mxu0 0
    %215 = vmatpush1.bf16.xpose.msra.mxu0 %v212
    %216 = vmatprep.subr.bf16.mxu0 0
    %217 = vmatpush1.bf16.xpose.msra.mxu0 0
    %218 = vmatprep.subr.bf16.mxu0 0
    %219 = vmatpush1.bf16.xpose.msra.mxu0 0
    %220 = vmatprep.subr.bf16.mxu0 0
    %221 = vmatpush1.bf16.xpose.msra.mxu0 0
    %222 = vmatprep.subr.bf16.mxu0 0
    %223 = vmatpush1.bf16.xpose.msra.mxu0 0
    %224 = vmatprep.subr.bf16.mxu0 0
    %225 = vmatpush1.bf16.xpose.msra.mxu0 0
    %226 = vmatprep.subr.bf16.mxu0 0
    %227 = vmatpush1.bf16.xpose.msra.mxu0 0
    %228 = vmatprep.subr.bf16.mxu0 0
    %229 = vmatpush1.bf16.xpose.msra.mxu0 0
    %230 = vmatprep.subr.bf16.mxu0 0
    %231 = vmatpush1.bf16.xpose.msra.mxu0 0
    %232 = vmatprep.subr.bf16.mxu0 0
    %233 = vmatpush1.bf16.xpose.msra.mxu0 0
    %234 = vmatprep.subr.bf16.mxu0 0
    %235 = vmatpush1.bf16.xpose.msra.mxu0 0
    %236 = vmatprep.subr.bf16.mxu0 0
    %237 = vmatpush1.bf16.xpose.msra.mxu0 0
    %238 = vmatprep.subr.bf16.mxu0 0
    %239 = vmatpush1.bf16.xpose.msra.mxu0 0
    %240 = vmatprep.subr.bf16.mxu0 0
    %241 = vmatpush1.bf16.xpose.msra.mxu0 0
    %242 = vmatprep.subr.bf16.mxu0 0
    %243 = vmatpush1.bf16.xpose.msra.mxu0 0
    %244 = vmatprep.subr.bf16.mxu0 0
    %245 = vmatpush1.bf16.xpose.msra.mxu0 0
    %246 = vmatprep.mubr.bf16.mxu0 0
    %247 = vmatmul.mubr.bf16.gmra.mrb[0].mxu0 %v209
    %v248 = vpop.f32.mrb[0].mxu0
    %v249 = vadd.f32 %v58, %v248
    %v250 = vpop.f32.mrb[0].mxu0
    %v251 = vpop.f32.mrb[0].mxu0
    %v252 = vpop.f32.mrb[0].mxu0
    %253 = vdwg.mxu0
    %vm254 = vcmask 64512
    %v255 = vsel %vm254, %v201, -inf
    %256 = vmax.xlane.f32.xlu0 %v255
    %v257 = vpop.xlane.xlu0 %256
    %v258 = vsel %vm254, %v249, -inf
    %259 = vmax.xlane.f32.xlu0 %v258
    %v260 = vpop.xlane.xlu0 %259
    %v261 = vsub.f32 %v201, %v257
    %v262 = vsub.f32 %v249, %v260
    %v263 = vmul.f32 %v261, 1.442695
    %v264 = vpow.pop %v263
    %v265 = vmul.f32 %v262, 1.442695
    %v266 = vpow.pop %v265
    %v267 = vsel %vm254, %v264, 0.0
    %268 = vadd.xlane.f32.xlu0 %v267
    %v269 = vpop.xlane.xlu0 %268
    %v270 = vsel %vm254, %v266, 0.0
    %271 = vadd.xlane.f32.xlu0 %v270
    %v272 = vpop.xlane.xlu0 %271
    %v273 = vrcp.pop %v269
    %v274 = vrcp.pop %v272
    %v275 = vmul.f32 %v264, %v273
    %v276 = vmul.f32 %v266, %v274
    %v277 = vpack.c.bf16 %v275, %v275
    %v278 = vpack.c.bf16 %v276, %v276
    %279 = vrot.lane.b32.xlu0 %v155, 64
    %v280 = vpop.permute.xlu0 %279
    %v282 = vsel %vm254, %v277, 0
    %vm284 = vcmask 1043456
    %v286 = vsel %vm284, %v280, 0
    %288 = vmatprep.subr.bf16.mxu0 0
    %289 = vmatpush1.bf16.msra.mxu0 %v286
    %290 = vmatprep.subr.bf16.mxu0 0
    %291 = vmatpush1.bf16.msra.mxu0 0
    %292 = vmatprep.subr.bf16.mxu0 0
    %293 = vmatpush1.bf16.msra.mxu0 0
    %294 = vmatprep.subr.bf16.mxu0 0
    %295 = vmatpush1.bf16.msra.mxu0 0
    %296 = vmatprep.subr.bf16.mxu0 0
    %297 = vmatpush1.bf16.msra.mxu0 0
    %298 = vmatprep.subr.bf16.mxu0 0
    %299 = vmatpush1.bf16.msra.mxu0 0
    %300 = vmatprep.subr.bf16.mxu0 0
    %301 = vmatpush1.bf16.msra.mxu0 0
    %302 = vmatprep.subr.bf16.mxu0 0
    %303 = vmatpush1.bf16.msra.mxu0 0
    %304 = vmatprep.subr.bf16.mxu0 0
    %305 = vmatpush1.bf16.msra.mxu0 0
    %306 = vmatprep.subr.bf16.mxu0 0
    %307 = vmatpush1.bf16.msra.mxu0 0
    %308 = vmatprep.subr.bf16.mxu0 0
    %309 = vmatpush1.bf16.msra.mxu0 0
    %310 = vmatprep.subr.bf16.mxu0 0
    %311 = vmatpush1.bf16.msra.mxu0 0
    %312 = vmatprep.subr.bf16.mxu0 0
    %313 = vmatpush1.bf16.msra.mxu0 0
    %314 = vmatprep.subr.bf16.mxu0 0
    %315 = vmatpush1.bf16.msra.mxu0 0
    %316 = vmatprep.subr.bf16.mxu0 0
    %317 = vmatpush1.bf16.msra.mxu0 0
    %318 = vmatprep.subr.bf16.mxu0 0
    %319 = vmatpush1.bf16.msra.mxu0 0
    %320 = vmatprep.mubr.bf16.mxu0 0
    %321 = vmatmul.mubr.bf16.gmra.mrb[0].mxu0 %v282
    %v322 = vpop.f32.mrb[0].mxu0
    %v323 = vadd.f32 0.0, %v322
    %v324 = vpop.f32.mrb[0].mxu0
    %v325 = vpop.f32.mrb[0].mxu0
    %v326 = vpop.f32.mrb[0].mxu0
    %327 = vdwg.mxu0
    %328 = vrot.lane.b32.xlu0 %v156, 64
    %v329 = vpop.permute.xlu0 %328
    %v331 = vsel %vm254, %v278, 0
    %v334 = vsel %vm284, %v329, 0
    %336 = vmatprep.subr.bf16.mxu0 0
    %337 = vmatpush1.bf16.msra.mxu0 %v334
    %338 = vmatprep.subr.bf16.mxu0 0
    %339 = vmatpush1.bf16.msra.mxu0 0
    %340 = vmatprep.subr.bf16.mxu0 0
    %341 = vmatpush1.bf16.msra.mxu0 0
    %342 = vmatprep.subr.bf16.mxu0 0
    %343 = vmatpush1.bf16.msra.mxu0 0
    %344 = vmatprep.subr.bf16.mxu0 0
    %345 = vmatpush1.bf16.msra.mxu0 0
    %346 = vmatprep.subr.bf16.mxu0 0
    %347 = vmatpush1.bf16.msra.mxu0 0
    %348 = vmatprep.subr.bf16.mxu0 0
    %349 = vmatpush1.bf16.msra.mxu0 0
    %350 = vmatprep.subr.bf16.mxu0 0
    %351 = vmatpush1.bf16.msra.mxu0 0
    %352 = vmatprep.subr.bf16.mxu0 0
    %353 = vmatpush1.bf16.msra.mxu0 0
    %354 = vmatprep.subr.bf16.mxu0 0
    %355 = vmatpush1.bf16.msra.mxu0 0
    %356 = vmatprep.subr.bf16.mxu0 0
    %357 = vmatpush1.bf16.msra.mxu0 0
    %358 = vmatprep.subr.bf16.mxu0 0
    %359 = vmatpush1.bf16.msra.mxu0 0
    %360 = vmatprep.subr.bf16.mxu0 0
    %361 = vmatpush1.bf16.msra.mxu0 0
    %362 = vmatprep.subr.bf16.mxu0 0
    %363 = vmatpush1.bf16.msra.mxu0 0
    %364 = vmatprep.subr.bf16.mxu0 0
    %365 = vmatpush1.bf16.msra.mxu0 0
    %366 = vmatprep.subr.bf16.mxu0 0
    %367 = vmatpush1.bf16.msra.mxu0 0
    %368 = vmatprep.mubr.bf16.mxu0 0
    %369 = vmatmul.mubr.bf16.gmra.mrb[0].mxu0 %v331
    %v370 = vpop.f32.mrb[0].mxu0
    %v371 = vadd.f32 0.0, %v370
    %v372 = vpop.f32.mrb[0].mxu0
    %v373 = vpop.f32.mrb[0].mxu0
    %v374 = vpop.f32.mrb[0].mxu0
    %375 = vdwg.mxu0
    %376 = vrot.lane.b32.xlu0 %v155, 112
    %v377 = vpop.permute.xlu0 %376
    %378 = vrot.lane.b32.xlu0 %v155, 80
    %v379 = vpop.permute.xlu0 %378
    %v381 = vsel %vm159, %v377, 0
    %v384 = vsel %vm159, %v379, 0
    %386 = vmatprep.subr.bf16.mxu0 0
    %387 = vmatpush1.bf16.xpose.msra.mxu0 %v384
    %388 = vmatprep.subr.bf16.mxu0 0
    %389 = vmatpush1.bf16.xpose.msra.mxu0 0
    %390 = vmatprep.subr.bf16.mxu0 0
    %391 = vmatpush1.bf16.xpose.msra.mxu0 0
    %392 = vmatprep.subr.bf16.mxu0 0
    %393 = vmatpush1.bf16.xpose.msra.mxu0 0
    %394 = vmatprep.subr.bf16.mxu0 0
    %395 = vmatpush1.bf16.xpose.msra.mxu0 0
    %396 = vmatprep.subr.bf16.mxu0 0
    %397 = vmatpush1.bf16.xpose.msra.mxu0 0
    %398 = vmatprep.subr.bf16.mxu0 0
    %399 = vmatpush1.bf16.xpose.msra.mxu0 0
    %400 = vmatprep.subr.bf16.mxu0 0
    %401 = vmatpush1.bf16.xpose.msra.mxu0 0
    %402 = vmatprep.subr.bf16.mxu0 0
    %403 = vmatpush1.bf16.xpose.msra.mxu0 0
    %404 = vmatprep.subr.bf16.mxu0 0
    %405 = vmatpush1.bf16.xpose.msra.mxu0 0
    %406 = vmatprep.subr.bf16.mxu0 0
    %407 = vmatpush1.bf16.xpose.msra.mxu0 0
    %408 = vmatprep.subr.bf16.mxu0 0
    %409 = vmatpush1.bf16.xpose.msra.mxu0 0
    %410 = vmatprep.subr.bf16.mxu0 0
    %411 = vmatpush1.bf16.xpose.msra.mxu0 0
    %412 = vmatprep.subr.bf16.mxu0 0
    %413 = vmatpush1.bf16.xpose.msra.mxu0 0
    %414 = vmatprep.subr.bf16.mxu0 0
    %415 = vmatpush1.bf16.xpose.msra.mxu0 0
    %416 = vmatprep.subr.bf16.mxu0 0
    %417 = vmatpush1.bf16.xpose.msra.mxu0 0
    %418 = vmatprep.mubr.bf16.mxu0 0
    %419 = vmatmul.mubr.bf16.gmra.mrb[0].mxu0 %v381
    %v420 = vpop.f32.mrb[0].mxu0
    %v421 = vadd.f32 %v61, %v420
    %v422 = vpop.f32.mrb[0].mxu0
    %v423 = vpop.f32.mrb[0].mxu0
    %v424 = vpop.f32.mrb[0].mxu0
    %425 = vdwg.mxu0
    %426 = vrot.lane.b32.xlu0 %v156, 112
    %v427 = vpop.permute.xlu0 %426
    %428 = vrot.lane.b32.xlu0 %v156, 80
    %v429 = vpop.permute.xlu0 %428
    %v431 = vsel %vm159, %v427, 0
    %v434 = vsel %vm159, %v429, 0
    %436 = vmatprep.subr.bf16.mxu0 0
    %437 = vmatpush1.bf16.xpose.msra.mxu0 %v434
    %438 = vmatprep.subr.bf16.mxu0 0
    %439 = vmatpush1.bf16.xpose.msra.mxu0 0
    %440 = vmatprep.subr.bf16.mxu0 0
    %441 = vmatpush1.bf16.xpose.msra.mxu0 0
    %442 = vmatprep.subr.bf16.mxu0 0
    %443 = vmatpush1.bf16.xpose.msra.mxu0 0
    %444 = vmatprep.subr.bf16.mxu0 0
    %445 = vmatpush1.bf16.xpose.msra.mxu0 0
    %446 = vmatprep.subr.bf16.mxu0 0
    %447 = vmatpush1.bf16.xpose.msra.mxu0 0
    %448 = vmatprep.subr.bf16.mxu0 0
    %449 = vmatpush1.bf16.xpose.msra.mxu0 0
    %450 = vmatprep.subr.bf16.mxu0 0
    %451 = vmatpush1.bf16.xpose.msra.mxu0 0
    %452 = vmatprep.subr.bf16.mxu0 0
    %453 = vmatpush1.bf16.xpose.msra.mxu0 0
    %454 = vmatprep.subr.bf16.mxu0 0
    %455 = vmatpush1.bf16.xpose.msra.mxu0 0
    %456 = vmatprep.subr.bf16.mxu0 0
    %457 = vmatpush1.bf16.xpose.msra.mxu0 0
    %458 = vmatprep.subr.bf16.mxu0 0
    %459 = vmatpush1.bf16.xpose.msra.mxu0 0
    %460 = vmatprep.subr.bf16.mxu0 0
    %461 = vmatpush1.bf16.xpose.msra.mxu0 0
    %462 = vmatprep.subr.bf16.mxu0 0
    %463 = vmatpush1.bf16.xpose.msra.mxu0 0
    %464 = vmatprep.subr.bf16.mxu0 0
    %465 = vmatpush1.bf16.xpose.msra.mxu0 0
    %466 = vmatprep.subr.bf16.mxu0 0
    %467 = vmatpush1.bf16.xpose.msra.mxu0 0
    %468 = vmatprep.mubr.bf16.mxu0 0
    %469 = vmatmul.mubr.bf16.gmra.mrb[0].mxu0 %v431
    %v470 = vpop.f32.mrb[0].mxu0
    %v471 = vadd.f32 %v62, %v470
    %v472 = vpop.f32.mrb[0].mxu0
    %v473 = vpop.f32.mrb[0].mxu0
    %v474 = vpop.f32.mrb[0].mxu0
    %475 = vdwg.mxu0
    %v476 = vsel %vm254, %v421, -inf
    %477 = vmax.xlane.f32.xlu0 %v476
    %v478 = vpop.xlane.xlu0 %477
    %v479 = vsel %vm254, %v471, -inf
    %480 = vmax.xlane.f32.xlu0 %v479
    %v481 = vpop.xlane.xlu0 %480
    %v482 = vsub.f32 %v421, %v478
    %v483 = vsub.f32 %v471, %v481
    %v484 = vmul.f32 %v482, 1.442695
    %v485 = vpow.pop %v484
    %v486 = vmul.f32 %v483, 1.442695
    %v487 = vpow.pop %v486
    %v488 = vsel %vm254, %v485, 0.0
    %489 = vadd.xlane.f32.xlu0 %v488
    %v490 = vpop.xlane.xlu0 %489
    %v491 = vsel %vm254, %v487, 0.0
    %492 = vadd.xlane.f32.xlu0 %v491
    %v493 = vpop.xlane.xlu0 %492
    %v494 = vrcp.pop %v490
    %v495 = vrcp.pop %v493
    %v496 = vmul.f32 %v485, %v494
    %v497 = vmul.f32 %v487, %v495
    %v498 = vpack.c.bf16 %v496, %v496
    %v499 = vpack.c.bf16 %v497, %v497
    %500 = vrot.lane.b32.xlu0 %v155, 48
    %v501 = vpop.permute.xlu0 %500
    %v503 = vsel %vm254, %v498, 0
    %v506 = vsel %vm284, %v501, 0
    %508 = vmatprep.subr.bf16.mxu0 0
    %509 = vmatpush1.bf16.msra.mxu0 %v506
    %510 = vmatprep.subr.bf16.mxu0 0
    %511 = vmatpush1.bf16.msra.mxu0 0
    %512 = vmatprep.subr.bf16.mxu0 0
    %513 = vmatpush1.bf16.msra.mxu0 0
    %514 = vmatprep.subr.bf16.mxu0 0
    %515 = vmatpush1.bf16.msra.mxu0 0
    %516 = vmatprep.subr.bf16.mxu0 0
    %517 = vmatpush1.bf16.msra.mxu0 0
    %518 = vmatprep.subr.bf16.mxu0 0
    %519 = vmatpush1.bf16.msra.mxu0 0
    %520 = vmatprep.subr.bf16.mxu0 0
    %521 = vmatpush1.bf16.msra.mxu0 0
    %522 = vmatprep.subr.bf16.mxu0 0
    %523 = vmatpush1.bf16.msra.mxu0 0
    %524 = vmatprep.subr.bf16.mxu0 0
    %525 = vmatpush1.bf16.msra.mxu0 0
    %526 = vmatprep.subr.bf16.mxu0 0
    %527 = vmatpush1.bf16.msra.mxu0 0
    %528 = vmatprep.subr.bf16.mxu0 0
    %529 = vmatpush1.bf16.msra.mxu0 0
    %530 = vmatprep.subr.bf16.mxu0 0
    %531 = vmatpush1.bf16.msra.mxu0 0
    %532 = vmatprep.subr.bf16.mxu0 0
    %533 = vmatpush1.bf16.msra.mxu0 0
    %534 = vmatprep.subr.bf16.mxu0 0
    %535 = vmatpush1.bf16.msra.mxu0 0
    %536 = vmatprep.subr.bf16.mxu0 0
    %537 = vmatpush1.bf16.msra.mxu0 0
    %538 = vmatprep.subr.bf16.mxu0 0
    %539 = vmatpush1.bf16.msra.mxu0 0
    %540 = vmatprep.mubr.bf16.mxu0 0
    %541 = vmatmul.mubr.bf16.gmra.mrb[0].mxu0 %v503
    %v542 = vpop.f32.mrb[0].mxu0
    %v543 = vadd.f32 0.0, %v542
    %v544 = vpop.f32.mrb[0].mxu0
    %v545 = vpop.f32.mrb[0].mxu0
    %v546 = vpop.f32.mrb[0].mxu0
    %547 = vdwg.mxu0
    %548 = vrot.lane.b32.xlu0 %v156, 48
    %v549 = vpop.permute.xlu0 %548
    %v551 = vsel %vm254, %v499, 0
    %v554 = vsel %vm284, %v549, 0
    %556 = vmatprep.subr.bf16.mxu0 0
    %557 = vmatpush1.bf16.msra.mxu0 %v554
    %558 = vmatprep.subr.bf16.mxu0 0
    %559 = vmatpush1.bf16.msra.mxu0 0
    %560 = vmatprep.subr.bf16.mxu0 0
    %561 = vmatpush1.bf16.msra.mxu0 0
    %562 = vmatprep.subr.bf16.mxu0 0
    %563 = vmatpush1.bf16.msra.mxu0 0
    %564 = vmatprep.subr.bf16.mxu0 0
    %565 = vmatpush1.bf16.msra.mxu0 0
    %566 = vmatprep.subr.bf16.mxu0 0
    %567 = vmatpush1.bf16.msra.mxu0 0
    %568 = vmatprep.subr.bf16.mxu0 0
    %569 = vmatpush1.bf16.msra.mxu0 0
    %570 = vmatprep.subr.bf16.mxu0 0
    %571 = vmatpush1.bf16.msra.mxu0 0
    %572 = vmatprep.subr.bf16.mxu0 0
    %573 = vmatpush1.bf16.msra.mxu0 0
    %574 = vmatprep.subr.bf16.mxu0 0
    %575 = vmatpush1.bf16.msra.mxu0 0
    %576 = vmatprep.subr.bf16.mxu0 0
    %577 = vmatpush1.bf16.msra.mxu0 0
    %578 = vmatprep.subr.bf16.mxu0 0
    %579 = vmatpush1.bf16.msra.mxu0 0
    %580 = vmatprep.subr.bf16.mxu0 0
    %581 = vmatpush1.bf16.msra.mxu0 0
    %582 = vmatprep.subr.bf16.mxu0 0
    %583 = vmatpush1.bf16.msra.mxu0 0
    %584 = vmatprep.subr.bf16.mxu0 0
    %585 = vmatpush1.bf16.msra.mxu0 0
    %586 = vmatprep.subr.bf16.mxu0 0
    %587 = vmatpush1.bf16.msra.mxu0 0
    %588 = vmatprep.mubr.bf16.mxu0 0
    %589 = vmatmul.mubr.bf16.gmra.mrb[0].mxu0 %v551
    %v590 = vpop.f32.mrb[0].mxu0
    %v591 = vadd.f32 0.0, %v590
    %v592 = vpop.f32.mrb[0].mxu0
    %v593 = vpop.f32.mrb[0].mxu0
    %v594 = vpop.f32.mrb[0].mxu0
    %595 = vdwg.mxu0
    %598 = vrot.lane.b32.xlu0 %v543, 16
    %v599 = vpop.permute.xlu0 %598
    %600 = vrot.lane.b32.xlu0 %v591, 16
    %v601 = vpop.permute.xlu0 %600
    %v604 = vsel %vm159, %v323, %v599
    %v605 = vsel %vm159, %v371, %v601
    %v606 = vpack.c.bf16 %v605, %v604
    %v607 = vld [vmem:[%s5] sm:$0xf]
    %v608 = vld [vmem:[%s5 + $0x4] sm:$0xf]
    %v609 = vld [vmem:[%s5 + $0x8] sm:$0xf]
    %v610 = vld [vmem:[%s5 + $0xc] sm:$0xf]
    %v615 = vunpack.c.l.b16 %v607
    %v616 = vunpack.c.l.b16 %v608
    %v617 = vunpack.c.l.b16 %v609
    %v618 = vunpack.c.l.b16 %v610
    %v619 = vpack.c.b16 %v616, %v615
    %v620 = vpack.c.b16 %v618, %v617
    %v624 = vsel %vm66, %v606, 0
    %626 = vmatprep.subr.bf16.mxu0 0
    %627 = vmatpush1.bf16.msra.mxu0 %v619
    %628 = vmatprep.subr.bf16.mxu0 0
    %629 = vmatpush1.bf16.msra.mxu0 %v620
    %630 = vmatprep.subr.bf16.mxu0 0
    %631 = vmatpush1.bf16.msra.mxu0 0
    %632 = vmatprep.subr.bf16.mxu0 0
    %633 = vmatpush1.bf16.msra.mxu0 0
    %634 = vmatprep.subr.bf16.mxu0 0
    %635 = vmatpush1.bf16.msra.mxu0 0
    %636 = vmatprep.subr.bf16.mxu0 0
    %637 = vmatpush1.bf16.msra.mxu0 0
    %638 = vmatprep.subr.bf16.mxu0 0
    %639 = vmatpush1.bf16.msra.mxu0 0
    %640 = vmatprep.subr.bf16.mxu0 0
    %641 = vmatpush1.bf16.msra.mxu0 0
    %642 = vmatprep.subr.bf16.mxu0 0
    %643 = vmatpush1.bf16.msra.mxu0 0
    %644 = vmatprep.subr.bf16.mxu0 0
    %645 = vmatpush1.bf16.msra.mxu0 0
    %646 = vmatprep.subr.bf16.mxu0 0
    %647 = vmatpush1.bf16.msra.mxu0 0
    %648 = vmatprep.subr.bf16.mxu0 0
    %649 = vmatpush1.bf16.msra.mxu0 0
    %650 = vmatprep.subr.bf16.mxu0 0
    %651 = vmatpush1.bf16.msra.mxu0 0
    %652 = vmatprep.subr.bf16.mxu0 0
    %653 = vmatpush1.bf16.msra.mxu0 0
    %654 = vmatprep.subr.bf16.mxu0 0
    %655 = vmatpush1.bf16.msra.mxu0 0
    %656 = vmatprep.subr.bf16.mxu0 0
    %657 = vmatpush1.bf16.msra.mxu0 0
    %658 = vmatprep.mubr.bf16.mxu0 0
    %659 = vmatmul.mubr.bf16.gmra.mrb[0].mxu0 %v624
    %v660 = vpop.f32.mrb[0].mxu0
    %v661 = vadd.f32 0.0, %v660
    %v662 = vpop.f32.mrb[0].mxu0
    %v663 = vpop.f32.mrb[0].mxu0
    %v664 = vadd.f32 0.0, %v663
    %v665 = vpop.f32.mrb[0].mxu0
    %666 = vdwg.mxu0
    %v667 = vadd.f32 %v40, %v661
    %v668 = vadd.f32 %v41, %v664
    %v669 = vld [vmem:[%s6] sm:$0x1]
    %v670 = vmul.f32 %v667, %v667
    %v671 = vmul.f32 %v668, %v668
    %v672 = vsel %vm66, %v670, 0.0
    %673 = vadd.xlane.f32.xlu0 %v672
    %v674 = vpop.xlane.xlu0 %673
    %v675 = vsel %vm66, %v671, 0.0
    %676 = vadd.xlane.f32.xlu0 %v675
    %v677 = vpop.xlane.xlu0 %676
    %v678 = vmul.f32 %v674, %v73
    %v679 = vmul.f32 %v677, %v73
    %v680 = vadd.f32 %v678, 1e-06
    %v681 = vadd.f32 %v679, 1e-06
    %v682 = vrsqrt.pop %v680
    %v683 = vrsqrt.pop %v681
    %v684 = vmul.f32 %v667, %v682
    %v685 = vmul.f32 %v668, %v683
    %v687 = vlaneseq
    %v688 = vshrl.u32 %v687, 7
    %v689 = vsub.s32 0, %v688
    %v690 = vrot.slane %v669, %v689
    %v692 = vmul.f32 %v684, %v690
    %v693 = vmul.f32 %v685, %v690
    %v694 = vpack.c.bf16 %v693, %v692
    %v695 = vld [vmem:[%s7] sm:$0xf]
    %v696 = vld [vmem:[%s7 + $0x4] sm:$0xf]
    %v697 = vld [vmem:[%s7 + $0x8] sm:$0xf]
    %v698 = vld [vmem:[%s7 + $0xc] sm:$0xf]
    %v703 = vunpack.c.l.b16 %v695
    %v704 = vunpack.c.l.b16 %v696
    %v705 = vunpack.c.l.b16 %v697
    %v706 = vunpack.c.l.b16 %v698
    %v707 = vpack.c.b16 %v704, %v703
    %v708 = vpack.c.b16 %v706, %v705
    %v712 = vsel %vm66, %v694, 0
    %714 = vmatprep.subr.bf16.mxu0 0
    %715 = vmatpush1.bf16.msra.mxu0 %v707
    %716 = vmatprep.subr.bf16.mxu0 0
    %717 = vmatpush1.bf16.msra.mxu0 %v708
    %718 = vmatprep.subr.bf16.mxu0 0
    %719 = vmatpush1.bf16.msra.mxu0 0
    %720 = vmatprep.subr.bf16.mxu0 0
    %721 = vmatpush1.bf16.msra.mxu0 0
    %722 = vmatprep.subr.bf16.mxu0 0
    %723 = vmatpush1.bf16.msra.mxu0 0
    %724 = vmatprep.subr.bf16.mxu0 0
    %725 = vmatpush1.bf16.msra.mxu0 0
    %726 = vmatprep.subr.bf16.mxu0 0
    %727 = vmatpush1.bf16.msra.mxu0 0
    %728 = vmatprep.subr.bf16.mxu0 0
    %729 = vmatpush1.bf16.msra.mxu0 0
    %730 = vmatprep.subr.bf16.mxu0 0
    %731 = vmatpush1.bf16.msra.mxu0 0
    %732 = vmatprep.subr.bf16.mxu0 0
    %733 = vmatpush1.bf16.msra.mxu0 0
    %734 = vmatprep.subr.bf16.mxu0 0
    %735 = vmatpush1.bf16.msra.mxu0 0
    %736 = vmatprep.subr.bf16.mxu0 0
    %737 = vmatpush1.bf16.msra.mxu0 0
    %738 = vmatprep.subr.bf16.mxu0 0
    %739 = vmatpush1.bf16.msra.mxu0 0
    %740 = vmatprep.subr.bf16.mxu0 0
    %741 = vmatpush1.bf16.msra.mxu0 0
    %742 = vmatprep.subr.bf16.mxu0 0
    %743 = vmatpush1.bf16.msra.mxu0 0
    %744 = vmatprep.subr.bf16.mxu0 0
    %745 = vmatpush1.bf16.msra.mxu0 0
    %746 = vmatprep.mubr.bf16.mxu0 0
    %747 = vmatmul.mubr.bf16.gmra.mrb[0].mxu0 %v712
    %v748 = vpop.f32.mrb[0].mxu0
    %v749 = vadd.f32 0.0, %v748
    %v750 = vpop.f32.mrb[0].mxu0
    %v751 = vpop.f32.mrb[0].mxu0
    %v752 = vadd.f32 0.0, %v751
    %v753 = vpop.f32.mrb[0].mxu0
    %754 = vdwg.mxu0
    %v755 = vld [vmem:[%s8] sm:$0xf]
    %v756 = vld [vmem:[%s8 + $0x4] sm:$0xf]
    %v757 = vld [vmem:[%s8 + $0x8] sm:$0xf]
    %v758 = vld [vmem:[%s8 + $0xc] sm:$0xf]
    %v763 = vunpack.c.l.b16 %v755
    %v764 = vunpack.c.l.b16 %v756
    %v765 = vunpack.c.l.b16 %v757
    %v766 = vunpack.c.l.b16 %v758
    %v767 = vpack.c.b16 %v764, %v763
    %v768 = vpack.c.b16 %v766, %v765
    %771 = vmatprep.subr.bf16.mxu0 0
    %772 = vmatpush1.bf16.msra.mxu0 %v767
    %773 = vmatprep.subr.bf16.mxu0 0
    %774 = vmatpush1.bf16.msra.mxu0 %v768
    %775 = vmatprep.subr.bf16.mxu0 0
    %776 = vmatpush1.bf16.msra.mxu0 0
    %777 = vmatprep.subr.bf16.mxu0 0
    %778 = vmatpush1.bf16.msra.mxu0 0
    %779 = vmatprep.subr.bf16.mxu0 0
    %780 = vmatpush1.bf16.msra.mxu0 0
    %781 = vmatprep.subr.bf16.mxu0 0
    %782 = vmatpush1.bf16.msra.mxu0 0
    %783 = vmatprep.subr.bf16.mxu0 0
    %784 = vmatpush1.bf16.msra.mxu0 0
    %785 = vmatprep.subr.bf16.mxu0 0
    %786 = vmatpush1.bf16.msra.mxu0 0
    %787 = vmatprep.subr.bf16.mxu0 0
    %788 = vmatpush1.bf16.msra.mxu0 0
    %789 = vmatprep.subr.bf16.mxu0 0
    %790 = vmatpush1.bf16.msra.mxu0 0
    %791 = vmatprep.subr.bf16.mxu0 0
    %792 = vmatpush1.bf16.msra.mxu0 0
    %793 = vmatprep.subr.bf16.mxu0 0
    %794 = vmatpush1.bf16.msra.mxu0 0
    %795 = vmatprep.subr.bf16.mxu0 0
    %796 = vmatpush1.bf16.msra.mxu0 0
    %797 = vmatprep.subr.bf16.mxu0 0
    %798 = vmatpush1.bf16.msra.mxu0 0
    %799 = vmatprep.subr.bf16.mxu0 0
    %800 = vmatpush1.bf16.msra.mxu0 0
    %801 = vmatprep.subr.bf16.mxu0 0
    %802 = vmatpush1.bf16.msra.mxu0 0
    %803 = vmatprep.mubr.bf16.mxu0 0
    %804 = vmatmul.mubr.bf16.gmra.mrb[0].mxu0 %v712
    %v805 = vpop.f32.mrb[0].mxu0
    %v806 = vadd.f32 0.0, %v805
    %v807 = vpop.f32.mrb[0].mxu0
    %v808 = vpop.f32.mrb[0].mxu0
    %v809 = vadd.f32 0.0, %v808
    %v810 = vpop.f32.mrb[0].mxu0
    %811 = vdwg.mxu0
    %v812 = vmul.f32 %v749, 0.5
    %v813 = vmul.f32 %v752, 0.5
    %v814 = vmul.f32 %v749, 0.044715
    %v815 = vmul.f32 %v752, 0.044715
    %v816 = vmul.f32 %v814, %v749
    %v817 = vmul.f32 %v815, %v752
    %v818 = vmul.f32 %v816, %v749
    %v819 = vmul.f32 %v817, %v752
    %v820 = vadd.f32 %v749, %v818
    %v821 = vadd.f32 %v752, %v819
    %v822 = vmul.f32 %v820, 0.7978846
    %v823 = vmul.f32 %v821, 0.7978846
    %v824 = vtanh.pop %v822
    %v825 = vtanh.pop %v823
    %v826 = vadd.f32 %v824, 1.0
    %v827 = vadd.f32 %v825, 1.0
    %v828 = vmul.f32 %v812, %v826
    %v829 = vmul.f32 %v813, %v827
    %v830 = vmul.f32 %v828, %v806
    %v831 = vmul.f32 %v829, %v809
    %v832 = vpack.c.bf16 %v831, %v830
    %v833 = vld [vmem:[%s9] sm:$0xf]
    %v834 = vld [vmem:[%s9 + $0x4] sm:$0xf]
    %v835 = vld [vmem:[%s9 + $0x8] sm:$0xf]
    %v836 = vld [vmem:[%s9 + $0xc] sm:$0xf]
    %v837 = vld [vmem:[%s9 + $0x10] sm:$0xf]
    %v838 = vld [vmem:[%s9 + $0x14] sm:$0xf]
    %v839 = vld [vmem:[%s9 + $0x18] sm:$0xf]
    %v840 = vld [vmem:[%s9 + $0x1c] sm:$0xf]
    %v849 = vunpack.c.l.b16 %v833
    %v850 = vunpack.c.l.b16 %v834
    %v851 = vunpack.c.l.b16 %v835
    %v852 = vunpack.c.l.b16 %v836
    %v853 = vunpack.c.l.b16 %v837
    %v854 = vunpack.c.l.b16 %v838
    %v855 = vunpack.c.l.b16 %v839
    %v856 = vunpack.c.l.b16 %v840
    %v857 = vpack.c.b16 %v850, %v849
    %v858 = vpack.c.b16 %v852, %v851
    %v859 = vpack.c.b16 %v854, %v853
    %v860 = vpack.c.b16 %v856, %v855
    %vm865 = vcmask 523264
    %v867 = vsel %vm865, %v832, 0
    %869 = vmatprep.subr.bf16.mxu0 0
    %870 = vmatpush1.bf16.msra.mxu0 %v857
    %871 = vmatprep.subr.bf16.mxu0 0
    %872 = vmatpush1.bf16.msra.mxu0 %v858
    %873 = vmatprep.subr.bf16.mxu0 0
    %874 = vmatpush1.bf16.msra.mxu0 %v859
    %875 = vmatprep.subr.bf16.mxu0 0
    %876 = vmatpush1.bf16.msra.mxu0 %v860
    %877 = vmatprep.subr.bf16.mxu0 0
    %878 = vmatpush1.bf16.msra.mxu0 0
    %879 = vmatprep.subr.bf16.mxu0 0
    %880 = vmatpush1.bf16.msra.mxu0 0
    %881 = vmatprep.subr.bf16.mxu0 0
    %882 = vmatpush1.bf16.msra.mxu0 0
    %883 = vmatprep.subr.bf16.mxu0 0
    %884 = vmatpush1.bf16.msra.mxu0 0
    %885 = vmatprep.subr.bf16.mxu0 0
    %886 = vmatpush1.bf16.msra.mxu0 0
    %887 = vmatprep.subr.bf16.mxu0 0
    %888 = vmatpush1.bf16.msra.mxu0 0
    %889 = vmatprep.subr.bf16.mxu0 0
    %890 = vmatpush1.bf16.msra.mxu0 0
    %891 = vmatprep.subr.bf16.mxu0 0
    %892 = vmatpush1.bf16.msra.mxu0 0
    %893 = vmatprep.subr.bf16.mxu0 0
    %894 = vmatpush1.bf16.msra.mxu0 0
    %895 = vmatprep.subr.bf16.mxu0 0
    %896 = vmatpush1.bf16.msra.mxu0 0
    %897 = vmatprep.subr.bf16.mxu0 0
    %898 = vmatpush1.bf16.msra.mxu0 0
    %899 = vmatprep.subr.bf16.mxu0 0
    %900 = vmatpush1.bf16.msra.mxu0 0
    %901 = vmatprep.mubr.bf16.mxu0 0
    %902 = vmatmul.mubr.bf16.gmra.mrb[0].mxu0 %v867
    %v903 = vpop.f32.mrb[0].mxu0
    %v904 = vadd.f32 0.0, %v903
    %v905 = vpop.f32.mrb[0].mxu0
    %v906 = vpop.f32.mrb[0].mxu0
    %v907 = vadd.f32 0.0, %v906
    %v908 = vpop.f32.mrb[0].mxu0
    %909 = vdwg.mxu0
    %v910 = vadd.f32 %v667, %v904
    %v911 = vadd.f32 %v668, %v907
    %s912 = scalar_lea.vmem %s3, 1
    %v913 = vld [vmem:[%s912] sm:$0x1]
    %v914 = vmul.f32 %v910, %v910
    %v915 = vmul.f32 %v911, %v911
    %v916 = vsel %vm66, %v914, 0.0
    %917 = vadd.xlane.f32.xlu0 %v916
    %v918 = vpop.xlane.xlu0 %917
    %v919 = vsel %vm66, %v915, 0.0
    %920 = vadd.xlane.f32.xlu0 %v919
    %v921 = vpop.xlane.xlu0 %920
    %v922 = vmul.f32 %v918, %v73
    %v923 = vmul.f32 %v921, %v73
    %v924 = vadd.f32 %v922, 1e-06
    %v925 = vadd.f32 %v923, 1e-06
    %v926 = vrsqrt.pop %v924
    %v927 = vrsqrt.pop %v925
    %v928 = vmul.f32 %v910, %v926
    %v929 = vmul.f32 %v911, %v927
    %v931 = vlaneseq
    %v932 = vshrl.u32 %v931, 7
    %v933 = vsub.s32 0, %v932
    %v934 = vrot.slane %v913, %v933
    %v936 = vmul.f32 %v928, %v934
    %v937 = vmul.f32 %v929, %v934
    %v938 = vpack.c.bf16 %v937, %v936
    %s939 = scalar_lea.vmem %s4, 16
    %v940 = vld [vmem:[%s939] sm:$0xf]
    %v941 = vld [vmem:[%s939 + $0x4] sm:$0xf]
    %v942 = vld [vmem:[%s939 + $0x8] sm:$0xf]
    %v943 = vld [vmem:[%s939 + $0xc] sm:$0xf]
    %v948 = vunpack.c.l.b16 %v940
    %v949 = vunpack.c.l.b16 %v941
    %v950 = vunpack.c.l.b16 %v942
    %v951 = vunpack.c.l.b16 %v943
    %v952 = vpack.c.b16 %v949, %v948
    %v953 = vpack.c.b16 %v951, %v950
    %v957 = vsel %vm66, %v938, 0
    %959 = vmatprep.subr.bf16.mxu0 0
    %960 = vmatpush1.bf16.msra.mxu0 %v952
    %961 = vmatprep.subr.bf16.mxu0 0
    %962 = vmatpush1.bf16.msra.mxu0 %v953
    %963 = vmatprep.subr.bf16.mxu0 0
    %964 = vmatpush1.bf16.msra.mxu0 0
    %965 = vmatprep.subr.bf16.mxu0 0
    %966 = vmatpush1.bf16.msra.mxu0 0
    %967 = vmatprep.subr.bf16.mxu0 0
    %968 = vmatpush1.bf16.msra.mxu0 0
    %969 = vmatprep.subr.bf16.mxu0 0
    %970 = vmatpush1.bf16.msra.mxu0 0
    %971 = vmatprep.subr.bf16.mxu0 0
    %972 = vmatpush1.bf16.msra.mxu0 0
    %973 = vmatprep.subr.bf16.mxu0 0
    %974 = vmatpush1.bf16.msra.mxu0 0
    %975 = vmatprep.subr.bf16.mxu0 0
    %976 = vmatpush1.bf16.msra.mxu0 0
    %977 = vmatprep.subr.bf16.mxu0 0
    %978 = vmatpush1.bf16.msra.mxu0 0
    %979 = vmatprep.subr.bf16.mxu0 0
    %980 = vmatpush1.bf16.msra.mxu0 0
    %981 = vmatprep.subr.bf16.mxu0 0
    %982 = vmatpush1.bf16.msra.mxu0 0
    %983 = vmatprep.subr.bf16.mxu0 0
    %984 = vmatpush1.bf16.msra.mxu0 0
    %985 = vmatprep.subr.bf16.mxu0 0
    %986 = vmatpush1.bf16.msra.mxu0 0
    %987 = vmatprep.subr.bf16.mxu0 0
    %988 = vmatpush1.bf16.msra.mxu0 0
    %989 = vmatprep.subr.bf16.mxu0 0
    %990 = vmatpush1.bf16.msra.mxu0 0
    %991 = vmatprep.mubr.bf16.mxu0 0
    %992 = vmatmul.mubr.bf16.gmra.mrb[0].mxu0 %v957
    %v993 = vpop.f32.mrb[0].mxu0
    %v994 = vadd.f32 0.0, %v993
    %v995 = vpop.f32.mrb[0].mxu0
    %v996 = vpop.f32.mrb[0].mxu0
    %v997 = vadd.f32 0.0, %v996
    %v998 = vpop.f32.mrb[0].mxu0
    %999 = vdwg.mxu0
    %v1000 = vpack.c.bf16 %v997, %v994
    %v1002 = vunpack.c.l.b16 %v1000
    %v1003 = vunpack.c.h.b16 %v1000
    %v1004 = vpack.c.b16 %v1002, %v1002
    %v1005 = vpack.c.b16 %v1003, %v1003
    %1006 = vrot.lane.b32.xlu0 %v1004, 96
    %v1007 = vpop.permute.xlu0 %1006
    %v1009 = vsel %vm159, %v1004, 0
    %v1012 = vsel %vm159, %v1007, 0
    %1014 = vmatprep.subr.bf16.mxu0 0
    %1015 = vmatpush1.bf16.xpose.msra.mxu0 %v1012
    %1016 = vmatprep.subr.bf16.mxu0 0
    %1017 = vmatpush1.bf16.xpose.msra.mxu0 0
    %1018 = vmatprep.subr.bf16.mxu0 0
    %1019 = vmatpush1.bf16.xpose.msra.mxu0 0
    %1020 = vmatprep.subr.bf16.mxu0 0
    %1021 = vmatpush1.bf16.xpose.msra.mxu0 0
    %1022 = vmatprep.subr.bf16.mxu0 0
    %1023 = vmatpush1.bf16.xpose.msra.mxu0 0
    %1024 = vmatprep.subr.bf16.mxu0 0
    %1025 = vmatpush1.bf16.xpose.msra.mxu0 0
    %1026 = vmatprep.subr.bf16.mxu0 0
    %1027 = vmatpush1.bf16.xpose.msra.mxu0 0
    %1028 = vmatprep.subr.bf16.mxu0 0
    %1029 = vmatpush1.bf16.xpose.msra.mxu0 0
    %1030 = vmatprep.subr.bf16.mxu0 0
    %1031 = vmatpush1.bf16.xpose.msra.mxu0 0
    %1032 = vmatprep.subr.bf16.mxu0 0
    %1033 = vmatpush1.bf16.xpose.msra.mxu0 0
    %1034 = vmatprep.subr.bf16.mxu0 0
    %1035 = vmatpush1.bf16.xpose.msra.mxu0 0
    %1036 = vmatprep.subr.bf16.mxu0 0
    %1037 = vmatpush1.bf16.xpose.msra.mxu0 0
    %1038 = vmatprep.subr.bf16.mxu0 0
    %1039 = vmatpush1.bf16.xpose.msra.mxu0 0
    %1040 = vmatprep.subr.bf16.mxu0 0
    %1041 = vmatpush1.bf16.xpose.msra.mxu0 0
    %1042 = vmatprep.subr.bf16.mxu0 0
    %1043 = vmatpush1.bf16.xpose.msra.mxu0 0
    %1044 = vmatprep.subr.bf16.mxu0 0
    %1045 = vmatpush1.bf16.xpose.msra.mxu0 0
    %1046 = vmatprep.mubr.bf16.mxu0 0
    %1047 = vmatmul.mubr.bf16.gmra.mrb[0].mxu0 %v1009
    %v1048 = vpop.f32.mrb[0].mxu0
    %v1049 = vadd.f32 %v57, %v1048
    %v1050 = vpop.f32.mrb[0].mxu0
    %v1051 = vpop.f32.mrb[0].mxu0
    %v1052 = vpop.f32.mrb[0].mxu0
    %1053 = vdwg.mxu0
    %1054 = vrot.lane.b32.xlu0 %v1005, 96
    %v1055 = vpop.permute.xlu0 %1054
    %v1057 = vsel %vm159, %v1005, 0
    %v1060 = vsel %vm159, %v1055, 0
    %1062 = vmatprep.subr.bf16.mxu0 0
    %1063 = vmatpush1.bf16.xpose.msra.mxu0 %v1060
    %1064 = vmatprep.subr.bf16.mxu0 0
    %1065 = vmatpush1.bf16.xpose.msra.mxu0 0
    %1066 = vmatprep.subr.bf16.mxu0 0
    %1067 = vmatpush1.bf16.xpose.msra.mxu0 0
    %1068 = vmatprep.subr.bf16.mxu0 0
    %1069 = vmatpush1.bf16.xpose.msra.mxu0 0
    %1070 = vmatprep.subr.bf16.mxu0 0
    %1071 = vmatpush1.bf16.xpose.msra.mxu0 0
    %1072 = vmatprep.subr.bf16.mxu0 0
    %1073 = vmatpush1.bf16.xpose.msra.mxu0 0
    %1074 = vmatprep.subr.bf16.mxu0 0
    %1075 = vmatpush1.bf16.xpose.msra.mxu0 0
    %1076 = vmatprep.subr.bf16.mxu0 0
    %1077 = vmatpush1.bf16.xpose.msra.mxu0 0
    %1078 = vmatprep.subr.bf16.mxu0 0
    %1079 = vmatpush1.bf16.xpose.msra.mxu0 0
    %1080 = vmatprep.subr.bf16.mxu0 0
    %1081 = vmatpush1.bf16.xpose.msra.mxu0 0
    %1082 = vmatprep.subr.bf16.mxu0 0
    %1083 = vmatpush1.bf16.xpose.msra.mxu0 0
    %1084 = vmatprep.subr.bf16.mxu0 0
    %1085 = vmatpush1.bf16.xpose.msra.mxu0 0
    %1086 = vmatprep.subr.bf16.mxu0 0
    %1087 = vmatpush1.bf16.xpose.msra.mxu0 0
    %1088 = vmatprep.subr.bf16.mxu0 0
    %1089 = vmatpush1.bf16.xpose.msra.mxu0 0
    %1090 = vmatprep.subr.bf16.mxu0 0
    %1091 = vmatpush1.bf16.xpose.msra.mxu0 0
    %1092 = vmatprep.subr.bf16.mxu0 0
    %1093 = vmatpush1.bf16.xpose.msra.mxu0 0
    %1094 = vmatprep.mubr.bf16.mxu0 0
    %1095 = vmatmul.mubr.bf16.gmra.mrb[0].mxu0 %v1057
    %v1096 = vpop.f32.mrb[0].mxu0
    %v1097 = vadd.f32 %v58, %v1096
    %v1098 = vpop.f32.mrb[0].mxu0
    %v1099 = vpop.f32.mrb[0].mxu0
    %v1100 = vpop.f32.mrb[0].mxu0
    %1101 = vdwg.mxu0
    %v1102 = vsel %vm254, %v1049, -inf
    %1103 = vmax.xlane.f32.xlu0 %v1102
    %v1104 = vpop.xlane.xlu0 %1103
    %v1105 = vsel %vm254, %v1097, -inf
    %1106 = vmax.xlane.f32.xlu0 %v1105
    %v1107 = vpop.xlane.xlu0 %1106
    %v1108 = vsub.f32 %v1049, %v1104
    %v1109 = vsub.f32 %v1097, %v1107
    %v1110 = vmul.f32 %v1108, 1.442695
    %v1111 = vpow.pop %v1110
    %v1112 = vmul.f32 %v1109, 1.442695
    %v1113 = vpow.pop %v1112
    %v1114 = vsel %vm254, %v1111, 0.0
    %1115 = vadd.xlane.f32.xlu0 %v1114
    %v1116 = vpop.xlane.xlu0 %1115
    %v1117 = vsel %vm254, %v1113, 0.0
    %1118 = vadd.xlane.f32.xlu0 %v1117
    %v1119 = vpop.xlane.xlu0 %1118
    %v1120 = vrcp.pop %v1116
    %v1121 = vrcp.pop %v1119
    %v1122 = vmul.f32 %v1111, %v1120
    %v1123 = vmul.f32 %v1113, %v1121
    %v1124 = vpack.c.bf16 %v1122, %v1122
    %v1125 = vpack.c.bf16 %v1123, %v1123
    %1126 = vrot.lane.b32.xlu0 %v1004, 64
    %v1127 = vpop.permute.xlu0 %1126
    %v1129 = vsel %vm254, %v1124, 0
    %v1132 = vsel %vm284, %v1127, 0
    %1134 = vmatprep.subr.bf16.mxu0 0
    %1135 = vmatpush1.bf16.msra.mxu0 %v1132
    %1136 = vmatprep.subr.bf16.mxu0 0
    %1137 = vmatpush1.bf16.msra.mxu0 0
    %1138 = vmatprep.subr.bf16.mxu0 0
    %1139 = vmatpush1.bf16.msra.mxu0 0
    %1140 = vmatprep.subr.bf16.mxu0 0
    %1141 = vmatpush1.bf16.msra.mxu0 0
    %1142 = vmatprep.subr.bf16.mxu0 0
    %1143 = vmatpush1.bf16.msra.mxu0 0
    %1144 = vmatprep.subr.bf16.mxu0 0
    %1145 = vmatpush1.bf16.msra.mxu0 0
    %1146 = vmatprep.subr.bf16.mxu0 0
    %1147 = vmatpush1.bf16.msra.mxu0 0
    %1148 = vmatprep.subr.bf16.mxu0 0
    %1149 = vmatpush1.bf16.msra.mxu0 0
    %1150 = vmatprep.subr.bf16.mxu0 0
    %1151 = vmatpush1.bf16.msra.mxu0 0
    %1152 = vmatprep.subr.bf16.mxu0 0
    %1153 = vmatpush1.bf16.msra.mxu0 0
    %1154 = vmatprep.subr.bf16.mxu0 0
    %1155 = vmatpush1.bf16.msra.mxu0 0
    %1156 = vmatprep.subr.bf16.mxu0 0
    %1157 = vmatpush1.bf16.msra.mxu0 0
    %1158 = vmatprep.subr.bf16.mxu0 0
    %1159 = vmatpush1.bf16.msra.mxu0 0
    %1160 = vmatprep.subr.bf16.mxu0 0
    %1161 = vmatpush1.bf16.msra.mxu0 0
    %1162 = vmatprep.subr.bf16.mxu0 0
    %1163 = vmatpush1.bf16.msra.mxu0 0
    %1164 = vmatprep.subr.bf16.mxu0 0
    %1165 = vmatpush1.bf16.msra.mxu0 0
    %1166 = vmatprep.mubr.bf16.mxu0 0
    %1167 = vmatmul.mubr.bf16.gmra.mrb[0].mxu0 %v1129
    %v1168 = vpop.f32.mrb[0].mxu0
    %v1169 = vadd.f32 0.0, %v1168
    %v1170 = vpop.f32.mrb[0].mxu0
    %v1171 = vpop.f32.mrb[0].mxu0
    %v1172 = vpop.f32.mrb[0].mxu0
    %1173 = vdwg.mxu0
    %1174 = vrot.lane.b32.xlu0 %v1005, 64
    %v1175 = vpop.permute.xlu0 %1174
    %v1177 = vsel %vm254, %v1125, 0
    %v1180 = vsel %vm284, %v1175, 0
    %1182 = vmatprep.subr.bf16.mxu0 0
    %1183 = vmatpush1.bf16.msra.mxu0 %v1180
    %1184 = vmatprep.subr.bf16.mxu0 0
    %1185 = vmatpush1.bf16.msra.mxu0 0
    %1186 = vmatprep.subr.bf16.mxu0 0
    %1187 = vmatpush1.bf16.msra.mxu0 0
    %1188 = vmatprep.subr.bf16.mxu0 0
    %1189 = vmatpush1.bf16.msra.mxu0 0
    %1190 = vmatprep.subr.bf16.mxu0 0
    %1191 = vmatpush1.bf16.msra.mxu0 0
    %1192 = vmatprep.subr.bf16.mxu0 0
    %1193 = vmatpush1.bf16.msra.mxu0 0
    %1194 = vmatprep.subr.bf16.mxu0 0
    %1195 = vmatpush1.bf16.msra.mxu0 0
    %1196 = vmatprep.subr.bf16.mxu0 0
    %1197 = vmatpush1.bf16.msra.mxu0 0
    %1198 = vmatprep.subr.bf16.mxu0 0
    %1199 = vmatpush1.bf16.msra.mxu0 0
    %1200 = vmatprep.subr.bf16.mxu0 0
    %1201 = vmatpush1.bf16.msra.mxu0 0
    %1202 = vmatprep.subr.bf16.mxu0 0
    %1203 = vmatpush1.bf16.msra.mxu0 0
    %1204 = vmatprep.subr.bf16.mxu0 0
    %1205 = vmatpush1.bf16.msra.mxu0 0
    %1206 = vmatprep.subr.bf16.mxu0 0
    %1207 = vmatpush1.bf16.msra.mxu0 0
    %1208 = vmatprep.subr.bf16.mxu0 0
    %1209 = vmatpush1.bf16.msra.mxu0 0
    %1210 = vmatprep.subr.bf16.mxu0 0
    %1211 = vmatpush1.bf16.msra.mxu0 0
    %1212 = vmatprep.subr.bf16.mxu0 0
    %1213 = vmatpush1.bf16.msra.mxu0 0
    %1214 = vmatprep.mubr.bf16.mxu0 0
    %1215 = vmatmul.mubr.bf16.gmra.mrb[0].mxu0 %v1177
    %v1216 = vpop.f32.mrb[0].mxu0
    %v1217 = vadd.f32 0.0, %v1216
    %v1218 = vpop.f32.mrb[0].mxu0
    %v1219 = vpop.f32.mrb[0].mxu0
    %v1220 = vpop.f32.mrb[0].mxu0
    %1221 = vdwg.mxu0
    %1222 = vrot.lane.b32.xlu0 %v1004, 112
    %v1223 = vpop.permute.xlu0 %1222
    %1224 = vrot.lane.b32.xlu0 %v1004, 80
    %v1225 = vpop.permute.xlu0 %1224
    %v1227 = vsel %vm159, %v1223, 0
    %v1230 = vsel %vm159, %v1225, 0
    %1232 = vmatprep.subr.bf16.mxu0 0
    %1233 = vmatpush1.bf16.xpose.msra.mxu0 %v1230
    %1234 = vmatprep.subr.bf16.mxu0 0
    %1235 = vmatpush1.bf16.xpose.msra.mxu0 0
    %1236 = vmatprep.subr.bf16.mxu0 0
    %1237 = vmatpush1.bf16.xpose.msra.mxu0 0
    %1238 = vmatprep.subr.bf16.mxu0 0
    %1239 = vmatpush1.bf16.xpose.msra.mxu0 0
    %1240 = vmatprep.subr.bf16.mxu0 0
    %1241 = vmatpush1.bf16.xpose.msra.mxu0 0
    %1242 = vmatprep.subr.bf16.mxu0 0
    %1243 = vmatpush1.bf16.xpose.msra.mxu0 0
    %1244 = vmatprep.subr.bf16.mxu0 0
    %1245 = vmatpush1.bf16.xpose.msra.mxu0 0
    %1246 = vmatprep.subr.bf16.mxu0 0
    %1247 = vmatpush1.bf16.xpose.msra.mxu0 0
    %1248 = vmatprep.subr.bf16.mxu0 0
    %1249 = vmatpush1.bf16.xpose.msra.mxu0 0
    %1250 = vmatprep.subr.bf16.mxu0 0
    %1251 = vmatpush1.bf16.xpose.msra.mxu0 0
    %1252 = vmatprep.subr.bf16.mxu0 0
    %1253 = vmatpush1.bf16.xpose.msra.mxu0 0
    %1254 = vmatprep.subr.bf16.mxu0 0
    %1255 = vmatpush1.bf16.xpose.msra.mxu0 0
    %1256 = vmatprep.subr.bf16.mxu0 0
    %1257 = vmatpush1.bf16.xpose.msra.mxu0 0
    %1258 = vmatprep.subr.bf16.mxu0 0
    %1259 = vmatpush1.bf16.xpose.msra.mxu0 0
    %1260 = vmatprep.subr.bf16.mxu0 0
    %1261 = vmatpush1.bf16.xpose.msra.mxu0 0
    %1262 = vmatprep.subr.bf16.mxu0 0
    %1263 = vmatpush1.bf16.xpose.msra.mxu0 0
    %1264 = vmatprep.mubr.bf16.mxu0 0
    %1265 = vmatmul.mubr.bf16.gmra.mrb[0].mxu0 %v1227
    %v1266 = vpop.f32.mrb[0].mxu0
    %v1267 = vadd.f32 %v61, %v1266
    %v1268 = vpop.f32.mrb[0].mxu0
    %v1269 = vpop.f32.mrb[0].mxu0
    %v1270 = vpop.f32.mrb[0].mxu0
    %1271 = vdwg.mxu0
    %1272 = vrot.lane.b32.xlu0 %v1005, 112
    %v1273 = vpop.permute.xlu0 %1272
    %1274 = vrot.lane.b32.xlu0 %v1005, 80
    %v1275 = vpop.permute.xlu0 %1274
    %v1277 = vsel %vm159, %v1273, 0
    %v1280 = vsel %vm159, %v1275, 0
    %1282 = vmatprep.subr.bf16.mxu0 0
    %1283 = vmatpush1.bf16.xpose.msra.mxu0 %v1280
    %1284 = vmatprep.subr.bf16.mxu0 0
    %1285 = vmatpush1.bf16.xpose.msra.mxu0 0
    %1286 = vmatprep.subr.bf16.mxu0 0
    %1287 = vmatpush1.bf16.xpose.msra.mxu0 0
    %1288 = vmatprep.subr.bf16.mxu0 0
    %1289 = vmatpush1.bf16.xpose.msra.mxu0 0
    %1290 = vmatprep.subr.bf16.mxu0 0
    %1291 = vmatpush1.bf16.xpose.msra.mxu0 0
    %1292 = vmatprep.subr.bf16.mxu0 0
    %1293 = vmatpush1.bf16.xpose.msra.mxu0 0
    %1294 = vmatprep.subr.bf16.mxu0 0
    %1295 = vmatpush1.bf16.xpose.msra.mxu0 0
    %1296 = vmatprep.subr.bf16.mxu0 0
    %1297 = vmatpush1.bf16.xpose.msra.mxu0 0
    %1298 = vmatprep.subr.bf16.mxu0 0
    %1299 = vmatpush1.bf16.xpose.msra.mxu0 0
    %1300 = vmatprep.subr.bf16.mxu0 0
    %1301 = vmatpush1.bf16.xpose.msra.mxu0 0
    %1302 = vmatprep.subr.bf16.mxu0 0
    %1303 = vmatpush1.bf16.xpose.msra.mxu0 0
    %1304 = vmatprep.subr.bf16.mxu0 0
    %1305 = vmatpush1.bf16.xpose.msra.mxu0 0
    %1306 = vmatprep.subr.bf16.mxu0 0
    %1307 = vmatpush1.bf16.xpose.msra.mxu0 0
    %1308 = vmatprep.subr.bf16.mxu0 0
    %1309 = vmatpush1.bf16.xpose.msra.mxu0 0
    %1310 = vmatprep.subr.bf16.mxu0 0
    %1311 = vmatpush1.bf16.xpose.msra.mxu0 0
    %1312 = vmatprep.subr.bf16.mxu0 0
    %1313 = vmatpush1.bf16.xpose.msra.mxu0 0
    %1314 = vmatprep.mubr.bf16.mxu0 0
    %1315 = vmatmul.mubr.bf16.gmra.mrb[0].mxu0 %v1277
    %v1316 = vpop.f32.mrb[0].mxu0
    %v1317 = vadd.f32 %v62, %v1316
    %v1318 = vpop.f32.mrb[0].mxu0
    %v1319 = vpop.f32.mrb[0].mxu0
    %v1320 = vpop.f32.mrb[0].mxu0
    %1321 = vdwg.mxu0
    %v1322 = vsel %vm254, %v1267, -inf
    %1323 = vmax.xlane.f32.xlu0 %v1322
    %v1324 = vpop.xlane.xlu0 %1323
    %v1325 = vsel %vm254, %v1317, -inf
    %1326 = vmax.xlane.f32.xlu0 %v1325
    %v1327 = vpop.xlane.xlu0 %1326
    %v1328 = vsub.f32 %v1267, %v1324
    %v1329 = vsub.f32 %v1317, %v1327
    %v1330 = vmul.f32 %v1328, 1.442695
    %v1331 = vpow.pop %v1330
    %v1332 = vmul.f32 %v1329, 1.442695
    %v1333 = vpow.pop %v1332
    %v1334 = vsel %vm254, %v1331, 0.0
    %1335 = vadd.xlane.f32.xlu0 %v1334
    %v1336 = vpop.xlane.xlu0 %1335
    %v1337 = vsel %vm254, %v1333, 0.0
    %1338 = vadd.xlane.f32.xlu0 %v1337
    %v1339 = vpop.xlane.xlu0 %1338
    %v1340 = vrcp.pop %v1336
    %v1341 = vrcp.pop %v1339
    %v1342 = vmul.f32 %v1331, %v1340
    %v1343 = vmul.f32 %v1333, %v1341
    %v1344 = vpack.c.bf16 %v1342, %v1342
    %v1345 = vpack.c.bf16 %v1343, %v1343
    %1346 = vrot.lane.b32.xlu0 %v1004, 48
    %v1347 = vpop.permute.xlu0 %1346
    %v1349 = vsel %vm254, %v1344, 0
    %v1352 = vsel %vm284, %v1347, 0
    %1354 = vmatprep.subr.bf16.mxu0 0
    %1355 = vmatpush1.bf16.msra.mxu0 %v1352
    %1356 = vmatprep.subr.bf16.mxu0 0
    %1357 = vmatpush1.bf16.msra.mxu0 0
    %1358 = vmatprep.subr.bf16.mxu0 0
    %1359 = vmatpush1.bf16.msra.mxu0 0
    %1360 = vmatprep.subr.bf16.mxu0 0
    %1361 = vmatpush1.bf16.msra.mxu0 0
    %1362 = vmatprep.subr.bf16.mxu0 0
    %1363 = vmatpush1.bf16.msra.mxu0 0
    %1364 = vmatprep.subr.bf16.mxu0 0
    %1365 = vmatpush1.bf16.msra.mxu0 0
    %1366 = vmatprep.subr.bf16.mxu0 0
    %1367 = vmatpush1.bf16.msra.mxu0 0
    %1368 = vmatprep.subr.bf16.mxu0 0
    %1369 = vmatpush1.bf16.msra.mxu0 0
    %1370 = vmatprep.subr.bf16.mxu0 0
    %1371 = vmatpush1.bf16.msra.mxu0 0
    %1372 = vmatprep.subr.bf16.mxu0 0
    %1373 = vmatpush1.bf16.msra.mxu0 0
    %1374 = vmatprep.subr.bf16.mxu0 0
    %1375 = vmatpush1.bf16.msra.mxu0 0
    %1376 = vmatprep.subr.bf16.mxu0 0
    %1377 = vmatpush1.bf16.msra.mxu0 0
    %1378 = vmatprep.subr.bf16.mxu0 0
    %1379 = vmatpush1.bf16.msra.mxu0 0
    %1380 = vmatprep.subr.bf16.mxu0 0
    %1381 = vmatpush1.bf16.msra.mxu0 0
    %1382 = vmatprep.subr.bf16.mxu0 0
    %1383 = vmatpush1.bf16.msra.mxu0 0
    %1384 = vmatprep.subr.bf16.mxu0 0
    %1385 = vmatpush1.bf16.msra.mxu0 0
    %1386 = vmatprep.mubr.bf16.mxu0 0
    %1387 = vmatmul.mubr.bf16.gmra.mrb[0].mxu0 %v1349
    %v1388 = vpop.f32.mrb[0].mxu0
    %v1389 = vadd.f32 0.0, %v1388
    %v1390 = vpop.f32.mrb[0].mxu0
    %v1391 = vpop.f32.mrb[0].mxu0
    %v1392 = vpop.f32.mrb[0].mxu0
    %1393 = vdwg.mxu0
    %1394 = vrot.lane.b32.xlu0 %v1005, 48
    %v1395 = vpop.permute.xlu0 %1394
    %v1397 = vsel %vm254, %v1345, 0
    %v1400 = vsel %vm284, %v1395, 0
    %1402 = vmatprep.subr.bf16.mxu0 0
    %1403 = vmatpush1.bf16.msra.mxu0 %v1400
    %1404 = vmatprep.subr.bf16.mxu0 0
    %1405 = vmatpush1.bf16.msra.mxu0 0
    %1406 = vmatprep.subr.bf16.mxu0 0
    %1407 = vmatpush1.bf16.msra.mxu0 0
    %1408 = vmatprep.subr.bf16.mxu0 0
    %1409 = vmatpush1.bf16.msra.mxu0 0
    %1410 = vmatprep.subr.bf16.mxu0 0
    %1411 = vmatpush1.bf16.msra.mxu0 0
    %1412 = vmatprep.subr.bf16.mxu0 0
    %1413 = vmatpush1.bf16.msra.mxu0 0
    %1414 = vmatprep.subr.bf16.mxu0 0
    %1415 = vmatpush1.bf16.msra.mxu0 0
    %1416 = vmatprep.subr.bf16.mxu0 0
    %1417 = vmatpush1.bf16.msra.mxu0 0
    %1418 = vmatprep.subr.bf16.mxu0 0
    %1419 = vmatpush1.bf16.msra.mxu0 0
    %1420 = vmatprep.subr.bf16.mxu0 0
    %1421 = vmatpush1.bf16.msra.mxu0 0
    %1422 = vmatprep.subr.bf16.mxu0 0
    %1423 = vmatpush1.bf16.msra.mxu0 0
    %1424 = vmatprep.subr.bf16.mxu0 0
    %1425 = vmatpush1.bf16.msra.mxu0 0
    %1426 = vmatprep.subr.bf16.mxu0 0
    %1427 = vmatpush1.bf16.msra.mxu0 0
    %1428 = vmatprep.subr.bf16.mxu0 0
    %1429 = vmatpush1.bf16.msra.mxu0 0
    %1430 = vmatprep.subr.bf16.mxu0 0
    %1431 = vmatpush1.bf16.msra.mxu0 0
    %1432 = vmatprep.subr.bf16.mxu0 0
    %1433 = vmatpush1.bf16.msra.mxu0 0
    %1434 = vmatprep.mubr.bf16.mxu0 0
    %1435 = vmatmul.mubr.bf16.gmra.mrb[0].mxu0 %v1397
    %v1436 = vpop.f32.mrb[0].mxu0
    %v1437 = vadd.f32 0.0, %v1436
    %v1438 = vpop.f32.mrb[0].mxu0
    %v1439 = vpop.f32.mrb[0].mxu0
    %v1440 = vpop.f32.mrb[0].mxu0
    %1441 = vdwg.mxu0
    %1444 = vrot.lane.b32.xlu0 %v1389, 16
    %v1445 = vpop.permute.xlu0 %1444
    %1446 = vrot.lane.b32.xlu0 %v1437, 16
    %v1447 = vpop.permute.xlu0 %1446
    %v1450 = vsel %vm159, %v1169, %v1445
    %v1451 = vsel %vm159, %v1217, %v1447
    %v1452 = vpack.c.bf16 %v1451, %v1450
    %s1453 = scalar_lea.vmem %s5, 16
    %v1454 = vld [vmem:[%s1453] sm:$0xf]
    %v1455 = vld [vmem:[%s1453 + $0x4] sm:$0xf]
    %v1456 = vld [vmem:[%s1453 + $0x8] sm:$0xf]
    %v1457 = vld [vmem:[%s1453 + $0xc] sm:$0xf]
    %v1462 = vunpack.c.l.b16 %v1454
    %v1463 = vunpack.c.l.b16 %v1455
    %v1464 = vunpack.c.l.b16 %v1456
    %v1465 = vunpack.c.l.b16 %v1457
    %v1466 = vpack.c.b16 %v1463, %v1462
    %v1467 = vpack.c.b16 %v1465, %v1464
    %v1471 = vsel %vm66, %v1452, 0
    %1473 = vmatprep.subr.bf16.mxu0 0
    %1474 = vmatpush1.bf16.msra.mxu0 %v1466
    %1475 = vmatprep.subr.bf16.mxu0 0
    %1476 = vmatpush1.bf16.msra.mxu0 %v1467
    %1477 = vmatprep.subr.bf16.mxu0 0
    %1478 = vmatpush1.bf16.msra.mxu0 0
    %1479 = vmatprep.subr.bf16.mxu0 0
    %1480 = vmatpush1.bf16.msra.mxu0 0
    %1481 = vmatprep.subr.bf16.mxu0 0
    %1482 = vmatpush1.bf16.msra.mxu0 0
    %1483 = vmatprep.subr.bf16.mxu0 0
    %1484 = vmatpush1.bf16.msra.mxu0 0
    %1485 = vmatprep.subr.bf16.mxu0 0
    %1486 = vmatpush1.bf16.msra.mxu0 0
    %1487 = vmatprep.subr.bf16.mxu0 0
    %1488 = vmatpush1.bf16.msra.mxu0 0
    %1489 = vmatprep.subr.bf16.mxu0 0
    %1490 = vmatpush1.bf16.msra.mxu0 0
    %1491 = vmatprep.subr.bf16.mxu0 0
    %1492 = vmatpush1.bf16.msra.mxu0 0
    %1493 = vmatprep.subr.bf16.mxu0 0
    %1494 = vmatpush1.bf16.msra.mxu0 0
    %1495 = vmatprep.subr.bf16.mxu0 0
    %1496 = vmatpush1.bf16.msra.mxu0 0
    %1497 = vmatprep.subr.bf16.mxu0 0
    %1498 = vmatpush1.bf16.msra.mxu0 0
    %1499 = vmatprep.subr.bf16.mxu0 0
    %1500 = vmatpush1.bf16.msra.mxu0 0
    %1501 = vmatprep.subr.bf16.mxu0 0
    %1502 = vmatpush1.bf16.msra.mxu0 0
    %1503 = vmatprep.subr.bf16.mxu0 0
    %1504 = vmatpush1.bf16.msra.mxu0 0
    %1505 = vmatprep.mubr.bf16.mxu0 0
    %1506 = vmatmul.mubr.bf16.gmra.mrb[0].mxu0 %v1471
    %v1507 = vpop.f32.mrb[0].mxu0
    %v1508 = vadd.f32 0.0, %v1507
    %v1509 = vpop.f32.mrb[0].mxu0
    %v1510 = vpop.f32.mrb[0].mxu0
    %v1511 = vadd.f32 0.0, %v1510
    %v1512 = vpop.f32.mrb[0].mxu0
    %1513 = vdwg.mxu0
    %v1514 = vadd.f32 %v910, %v1508
    %v1515 = vadd.f32 %v911, %v1511
    %s1516 = scalar_lea.vmem %s6, 1
    %v1517 = vld [vmem:[%s1516] sm:$0x1]
    %v1518 = vmul.f32 %v1514, %v1514
    %v1519 = vmul.f32 %v1515, %v1515
    %v1520 = vsel %vm66, %v1518, 0.0
    %1521 = vadd.xlane.f32.xlu0 %v1520
    %v1522 = vpop.xlane.xlu0 %1521
    %v1523 = vsel %vm66, %v1519, 0.0
    %1524 = vadd.xlane.f32.xlu0 %v1523
    %v1525 = vpop.xlane.xlu0 %1524
    %v1526 = vmul.f32 %v1522, %v73
    %v1527 = vmul.f32 %v1525, %v73
    %v1528 = vadd.f32 %v1526, 1e-06
    %v1529 = vadd.f32 %v1527, 1e-06
    %v1530 = vrsqrt.pop %v1528
    %v1531 = vrsqrt.pop %v1529
    %v1532 = vmul.f32 %v1514, %v1530
    %v1533 = vmul.f32 %v1515, %v1531
    %v1535 = vlaneseq
    %v1536 = vshrl.u32 %v1535, 7
    %v1537 = vsub.s32 0, %v1536
    %v1538 = vrot.slane %v1517, %v1537
    %v1540 = vmul.f32 %v1532, %v1538
    %v1541 = vmul.f32 %v1533, %v1538
    %v1542 = vpack.c.bf16 %v1541, %v1540
    %s1543 = scalar_lea.vmem %s7, 16
    %v1544 = vld [vmem:[%s1543] sm:$0xf]
    %v1545 = vld [vmem:[%s1543 + $0x4] sm:$0xf]
    %v1546 = vld [vmem:[%s1543 + $0x8] sm:$0xf]
    %v1547 = vld [vmem:[%s1543 + $0xc] sm:$0xf]
    %v1552 = vunpack.c.l.b16 %v1544
    %v1553 = vunpack.c.l.b16 %v1545
    %v1554 = vunpack.c.l.b16 %v1546
    %v1555 = vunpack.c.l.b16 %v1547
    %v1556 = vpack.c.b16 %v1553, %v1552
    %v1557 = vpack.c.b16 %v1555, %v1554
    %v1561 = vsel %vm66, %v1542, 0
    %1563 = vmatprep.subr.bf16.mxu0 0
    %1564 = vmatpush1.bf16.msra.mxu0 %v1556
    %1565 = vmatprep.subr.bf16.mxu0 0
    %1566 = vmatpush1.bf16.msra.mxu0 %v1557
    %1567 = vmatprep.subr.bf16.mxu0 0
    %1568 = vmatpush1.bf16.msra.mxu0 0
    %1569 = vmatprep.subr.bf16.mxu0 0
    %1570 = vmatpush1.bf16.msra.mxu0 0
    %1571 = vmatprep.subr.bf16.mxu0 0
    %1572 = vmatpush1.bf16.msra.mxu0 0
    %1573 = vmatprep.subr.bf16.mxu0 0
    %1574 = vmatpush1.bf16.msra.mxu0 0
    %1575 = vmatprep.subr.bf16.mxu0 0
    %1576 = vmatpush1.bf16.msra.mxu0 0
    %1577 = vmatprep.subr.bf16.mxu0 0
    %1578 = vmatpush1.bf16.msra.mxu0 0
    %1579 = vmatprep.subr.bf16.mxu0 0
    %1580 = vmatpush1.bf16.msra.mxu0 0
    %1581 = vmatprep.subr.bf16.mxu0 0
    %1582 = vmatpush1.bf16.msra.mxu0 0
    %1583 = vmatprep.subr.bf16.mxu0 0
    %1584 = vmatpush1.bf16.msra.mxu0 0
    %1585 = vmatprep.subr.bf16.mxu0 0
    %1586 = vmatpush1.bf16.msra.mxu0 0
    %1587 = vmatprep.subr.bf16.mxu0 0
    %1588 = vmatpush1.bf16.msra.mxu0 0
    %1589 = vmatprep.subr.bf16.mxu0 0
    %1590 = vmatpush1.bf16.msra.mxu0 0
    %1591 = vmatprep.subr.bf16.mxu0 0
    %1592 = vmatpush1.bf16.msra.mxu0 0
    %1593 = vmatprep.subr.bf16.mxu0 0
    %1594 = vmatpush1.bf16.msra.mxu0 0
    %1595 = vmatprep.mubr.bf16.mxu0 0
    %1596 = vmatmul.mubr.bf16.gmra.mrb[0].mxu0 %v1561
    %v1597 = vpop.f32.mrb[0].mxu0
    %v1598 = vadd.f32 0.0, %v1597
    %v1599 = vpop.f32.mrb[0].mxu0
    %v1600 = vpop.f32.mrb[0].mxu0
    %v1601 = vadd.f32 0.0, %v1600
    %v1602 = vpop.f32.mrb[0].mxu0
    %1603 = vdwg.mxu0
    %s1604 = scalar_lea.vmem %s8, 16
    %v1605 = vld [vmem:[%s1604] sm:$0xf]
    %v1606 = vld [vmem:[%s1604 + $0x4] sm:$0xf]
    %v1607 = vld [vmem:[%s1604 + $0x8] sm:$0xf]
    %v1608 = vld [vmem:[%s1604 + $0xc] sm:$0xf]
    %v1613 = vunpack.c.l.b16 %v1605
    %v1614 = vunpack.c.l.b16 %v1606
    %v1615 = vunpack.c.l.b16 %v1607
    %v1616 = vunpack.c.l.b16 %v1608
    %v1617 = vpack.c.b16 %v1614, %v1613
    %v1618 = vpack.c.b16 %v1616, %v1615
    %1621 = vmatprep.subr.bf16.mxu0 0
    %1622 = vmatpush1.bf16.msra.mxu0 %v1617
    %1623 = vmatprep.subr.bf16.mxu0 0
    %1624 = vmatpush1.bf16.msra.mxu0 %v1618
    %1625 = vmatprep.subr.bf16.mxu0 0
    %1626 = vmatpush1.bf16.msra.mxu0 0
    %1627 = vmatprep.subr.bf16.mxu0 0
    %1628 = vmatpush1.bf16.msra.mxu0 0
    %1629 = vmatprep.subr.bf16.mxu0 0
    %1630 = vmatpush1.bf16.msra.mxu0 0
    %1631 = vmatprep.subr.bf16.mxu0 0
    %1632 = vmatpush1.bf16.msra.mxu0 0
    %1633 = vmatprep.subr.bf16.mxu0 0
    %1634 = vmatpush1.bf16.msra.mxu0 0
    %1635 = vmatprep.subr.bf16.mxu0 0
    %1636 = vmatpush1.bf16.msra.mxu0 0
    %1637 = vmatprep.subr.bf16.mxu0 0
    %1638 = vmatpush1.bf16.msra.mxu0 0
    %1639 = vmatprep.subr.bf16.mxu0 0
    %1640 = vmatpush1.bf16.msra.mxu0 0
    %1641 = vmatprep.subr.bf16.mxu0 0
    %1642 = vmatpush1.bf16.msra.mxu0 0
    %1643 = vmatprep.subr.bf16.mxu0 0
    %1644 = vmatpush1.bf16.msra.mxu0 0
    %1645 = vmatprep.subr.bf16.mxu0 0
    %1646 = vmatpush1.bf16.msra.mxu0 0
    %1647 = vmatprep.subr.bf16.mxu0 0
    %1648 = vmatpush1.bf16.msra.mxu0 0
    %1649 = vmatprep.subr.bf16.mxu0 0
    %1650 = vmatpush1.bf16.msra.mxu0 0
    %1651 = vmatprep.subr.bf16.mxu0 0
    %1652 = vmatpush1.bf16.msra.mxu0 0
    %1653 = vmatprep.mubr.bf16.mxu0 0
    %1654 = vmatmul.mubr.bf16.gmra.mrb[0].mxu0 %v1561
    %v1655 = vpop.f32.mrb[0].mxu0
    %v1656 = vadd.f32 0.0, %v1655
    %v1657 = vpop.f32.mrb[0].mxu0
    %v1658 = vpop.f32.mrb[0].mxu0
    %v1659 = vadd.f32 0.0, %v1658
    %v1660 = vpop.f32.mrb[0].mxu0
    %1661 = vdwg.mxu0
    %v1662 = vmul.f32 %v1598, 0.5
    %v1663 = vmul.f32 %v1601, 0.5
    %v1664 = vmul.f32 %v1598, 0.044715
    %v1665 = vmul.f32 %v1601, 0.044715
    %v1666 = vmul.f32 %v1664, %v1598
    %v1667 = vmul.f32 %v1665, %v1601
    %v1668 = vmul.f32 %v1666, %v1598
    %v1669 = vmul.f32 %v1667, %v1601
    %v1670 = vadd.f32 %v1598, %v1668
    %v1671 = vadd.f32 %v1601, %v1669
    %v1672 = vmul.f32 %v1670, 0.7978846
    %v1673 = vmul.f32 %v1671, 0.7978846
    %v1674 = vtanh.pop %v1672
    %v1675 = vtanh.pop %v1673
    %v1676 = vadd.f32 %v1674, 1.0
    %v1677 = vadd.f32 %v1675, 1.0
    %v1678 = vmul.f32 %v1662, %v1676
    %v1679 = vmul.f32 %v1663, %v1677
    %v1680 = vmul.f32 %v1678, %v1656
    %v1681 = vmul.f32 %v1679, %v1659
    %v1682 = vpack.c.bf16 %v1681, %v1680
    %s1683 = scalar_lea.vmem %s9, 32
    %v1684 = vld [vmem:[%s1683] sm:$0xf]
    %v1685 = vld [vmem:[%s1683 + $0x4] sm:$0xf]
    %v1686 = vld [vmem:[%s1683 + $0x8] sm:$0xf]
    %v1687 = vld [vmem:[%s1683 + $0xc] sm:$0xf]
    %v1688 = vld [vmem:[%s1683 + $0x10] sm:$0xf]
    %v1689 = vld [vmem:[%s1683 + $0x14] sm:$0xf]
    %v1690 = vld [vmem:[%s1683 + $0x18] sm:$0xf]
    %v1691 = vld [vmem:[%s1683 + $0x1c] sm:$0xf]
    %v1700 = vunpack.c.l.b16 %v1684
    %v1701 = vunpack.c.l.b16 %v1685
    %v1702 = vunpack.c.l.b16 %v1686
    %v1703 = vunpack.c.l.b16 %v1687
    %v1704 = vunpack.c.l.b16 %v1688
    %v1705 = vunpack.c.l.b16 %v1689
    %v1706 = vunpack.c.l.b16 %v1690
    %v1707 = vunpack.c.l.b16 %v1691
    %v1708 = vpack.c.b16 %v1701, %v1700
    %v1709 = vpack.c.b16 %v1703, %v1702
    %v1710 = vpack.c.b16 %v1705, %v1704
    %v1711 = vpack.c.b16 %v1707, %v1706
    %v1717 = vsel %vm865, %v1682, 0
    %1719 = vmatprep.subr.bf16.mxu0 0
    %1720 = vmatpush1.bf16.msra.mxu0 %v1708
    %1721 = vmatprep.subr.bf16.mxu0 0
    %1722 = vmatpush1.bf16.msra.mxu0 %v1709
    %1723 = vmatprep.subr.bf16.mxu0 0
    %1724 = vmatpush1.bf16.msra.mxu0 %v1710
    %1725 = vmatprep.subr.bf16.mxu0 0
    %1726 = vmatpush1.bf16.msra.mxu0 %v1711
    %1727 = vmatprep.subr.bf16.mxu0 0
    %1728 = vmatpush1.bf16.msra.mxu0 0
    %1729 = vmatprep.subr.bf16.mxu0 0
    %1730 = vmatpush1.bf16.msra.mxu0 0
    %1731 = vmatprep.subr.bf16.mxu0 0
    %1732 = vmatpush1.bf16.msra.mxu0 0
    %1733 = vmatprep.subr.bf16.mxu0 0
    %1734 = vmatpush1.bf16.msra.mxu0 0
    %1735 = vmatprep.subr.bf16.mxu0 0
    %1736 = vmatpush1.bf16.msra.mxu0 0
    %1737 = vmatprep.subr.bf16.mxu0 0
    %1738 = vmatpush1.bf16.msra.mxu0 0
    %1739 = vmatprep.subr.bf16.mxu0 0
    %1740 = vmatpush1.bf16.msra.mxu0 0
    %1741 = vmatprep.subr.bf16.mxu0 0
    %1742 = vmatpush1.bf16.msra.mxu0 0
    %1743 = vmatprep.subr.bf16.mxu0 0
    %1744 = vmatpush1.bf16.msra.mxu0 0
    %1745 = vmatprep.subr.bf16.mxu0 0
    %1746 = vmatpush1.bf16.msra.mxu0 0
    %1747 = vmatprep.subr.bf16.mxu0 0
    %1748 = vmatpush1.bf16.msra.mxu0 0
    %1749 = vmatprep.subr.bf16.mxu0 0
    %1750 = vmatpush1.bf16.msra.mxu0 0
    %1751 = vmatprep.mubr.bf16.mxu0 0
    %1752 = vmatmul.mubr.bf16.gmra.mrb[0].mxu0 %v1717
    %v1753 = vpop.f32.mrb[0].mxu0
    %v1754 = vadd.f32 0.0, %v1753
    %v1755 = vpop.f32.mrb[0].mxu0
    %v1756 = vpop.f32.mrb[0].mxu0
    %v1757 = vadd.f32 0.0, %v1756
    %v1758 = vpop.f32.mrb[0].mxu0
    %1759 = vdwg.mxu0
    %v1760 = vadd.f32 %v1514, %v1754
    %v1761 = vadd.f32 %v1515, %v1757
    %v1762 = vld [vmem:[%s10] sm:$0x1]
    %v1763 = vmul.f32 %v1760, %v1760
    %v1764 = vmul.f32 %v1761, %v1761
    %v1765 = vsel %vm66, %v1763, 0.0
    %1766 = vadd.xlane.f32.xlu0 %v1765
    %v1767 = vpop.xlane.xlu0 %1766
    %v1768 = vsel %vm66, %v1764, 0.0
    %1769 = vadd.xlane.f32.xlu0 %v1768
    %v1770 = vpop.xlane.xlu0 %1769
    %v1771 = vmul.f32 %v1767, %v73
    %v1772 = vmul.f32 %v1770, %v73
    %v1773 = vadd.f32 %v1771, 1e-06
    %v1774 = vadd.f32 %v1772, 1e-06
    %v1775 = vrsqrt.pop %v1773
    %v1776 = vrsqrt.pop %v1774
    %v1777 = vmul.f32 %v1760, %v1775
    %v1778 = vmul.f32 %v1761, %v1776
    %v1780 = vlaneseq
    %v1781 = vshrl.u32 %v1780, 7
    %v1782 = vsub.s32 0, %v1781
    %v1783 = vrot.slane %v1762, %v1782
    %v1785 = vmul.f32 %v1777, %v1783
    %v1786 = vmul.f32 %v1778, %v1783
    %1787 = vst.msk [vmem:[#allocation2] sm:$0xff] %vm66, %v1785
    %1788 = vst.msk [vmem:[#allocation2 + $0x8] sm:$0xff] %vm66, %v1786
    // Predicated region
    $region46: #{ankh_for_embedding.1} parent=1 // pred_check
      _
    $region47: #{ankh_for_embedding.1} parent=1 // pred_check_branch
      %1790 = sbr.rel (0) target = $region49
    $region48: #{ankh_for_embedding.1} parent=1 // pred_region
      %s1792 = ssub.s32 256, 256
      %1793 = vsyncadd [#allocation3], %s1792
      %s1794 = sshll.u32 [#allocation2], 4
      %s1795 = int_to_ptr.vmem [resolvable:$true] %s1794
      %1800 = dma.vmem_to_hbm [thread:$0]  %s1795, 256, %s11, [#allocation3], 128, 128, 8
    $region49: #{ankh_for_embedding.1} parent=1 // pred_fallthru
      _
    // Predicated region
    $region50: #{ankh_for_embedding.1} parent=1 // pred_check
      _
    $region51: #{ankh_for_embedding.1} parent=1 // pred_check_branch
      %1802 = sbr.rel (0) target = $region53
    $region52: #{ankh_for_embedding.1} parent=1 // pred_region
      %1803 = dma.done [#allocation3], 256
    $region53: #{ankh_for_embedding.1} parent=1 // pred_fallthru
      _
    %1804 = vsyncpa [#allocation3], 1

</llo_original>
